<compile_context>
chip_gen: v7x
topology: tpu7x:2x2x1
jax: 0.10.0
libtpu: 0.0.40
codegen_flags: <defaults>
</compile_context>

<pallas_src>
import functools

import jax
import jax.numpy as jnp
from jax.experimental import pallas as pl
from jax.experimental.pallas import tpu as pltpu


LN_EPS = 1e-5  # nn.LayerNorm default


def _layernorm(x, gamma, beta):
    # LayerNorm over the last axis, biased variance, eps = 1e-5 (PyTorch default).
    mean = jnp.mean(x, axis=-1, keepdims=True)
    centered = x - mean
    var = jnp.mean(centered * centered, axis=-1, keepdims=True)
    inv = jax.lax.rsqrt(var + LN_EPS)          # EUP rsqrt, f32 (v5e-safe)
    return centered * inv * gamma + beta


def critic_kernel(
    state_ref, action_ref,          # (TILE_B, in_dims), (TILE_B, n_actions)
    w1_ref, p1_ref,                 # (in_dims, H1) bf16, (3, H1) f32 [b1; g1; be1]
    w2_ref, wa_ref, p2_ref,         # (H1, H2) bf16, (n_act, H2) f32, (5, H2) f32 [b2; g2; be2; ba; wc]
    bc_ref,                         # (1, 1) f32 in SMEM
    out_ref,                        # (1, TILE_B) f32  -- lane-dense batch row
):
    b1, g1, be1 = p1_ref[0:1, :], p1_ref[1:2, :], p1_ref[2:3, :]
    b2, g2, be2 = p2_ref[0:1, :], p2_ref[1:2, :], p2_ref[2:3, :]
    ba, wc_row = p2_ref[3:4, :], p2_ref[4:5, :]
    bc = bc_ref[0, 0]

    # ---- state path (kept sequential so h1/s are dead before later stages) ----
    # s = relu(LayerNorm(state @ W1 + b1)) : bf16 at the MXU, f32 elementwise.
    h1 = jnp.dot(state_ref[...].astype(jnp.bfloat16), w1_ref[...],
                 preferred_element_type=jnp.float32) + b1
    s = jnp.maximum(_layernorm(h1, g1, be1), 0.0)

    # s2 = LayerNorm(s @ W2 + b2) : the only big-K matmul, bf16 MXU / f32 acc.
    h2 = jnp.dot(s.astype(jnp.bfloat16), w2_ref[...],
                 preferred_element_type=jnp.float32) + b2
    s2 = _layernorm(h2, g2, be2)

    # ---- action path ----
    # a = relu(action @ Wa + ba).  K = n_actions is tiny (~4): an unrolled f32
    # VPU FMA chain beats a degenerate MXU push and removes a bf16 cast.
    act = action_ref[...].astype(jnp.float32)
    wa = wa_ref[...]
    a = act[:, 0:1] * wa[0:1, :]
    for k in range(1, act.shape[1]):
        a = a + act[:, k:k + 1] * wa[k:k + 1, :]
    a = jnp.maximum(a + ba, 0.0)

    # ---- combine ----
    comb = jnp.maximum(s2 + a, 0.0)            # (TILE_B, H2) f32
    # q = comb @ wc + bc, computed as wc(1,H2) . comb^T (contract last dims) so
    # the batch lands in the lane dimension: one tiny K=H2 MXU push and a
    # lane-dense (1, TILE_B) output row (full unmasked vst).
    q_row = jnp.einsum("oh,bh->ob", wc_row, comb,
                       preferred_element_type=jnp.float32) + bc
    out_ref[...] = q_row.astype(out_ref.dtype)


def _pick_tile_b(batch):
    """Batch-tile heuristic.

    * batch < 256: one full-batch tile (single grid step; no pipeline
      bookkeeping -- the right call on single-TC v5e/v6e, and batches this
      small cannot feed two v7x cores profitably anyway).
    * batch >= 256: 128-row tiles -> dense MXU M dim, lane-dense 128-wide
      output blocks, and >=2 grid steps so dimension_semantics=("parallel",)
      can split the batch across v7x's two TensorCores.
    """
    if batch >= 256:
        return 128
    return max(8, ((batch + 7) // 8) * 8)


@functools.partial(jax.jit, static_argnames=("tile_b",))
def critic_forward(state, action, params, *, tile_b=None):
    """Forward pass.  params = (w1_bf16, pack1, w2_bf16, wa_f32, pack2, bc)."""
    w1, pack1, w2, wa, pack2, bc = params
    B, in_dims = state.shape
    n_act = action.shape[1]
    H1 = w1.shape[1]
    H2 = w2.shape[1]

    if tile_b is None:
        tile_b = _pick_tile_b(B)

    # Pad the batch to a multiple of the tile (padded rows give finite garbage
    # that is sliced off; LayerNorm stays finite thanks to eps).
    Bp = ((B + tile_b - 1) // tile_b) * tile_b
    if Bp != B:
        state = jnp.pad(state, ((0, Bp - B), (0, 0)))
        action = jnp.pad(action, ((0, Bp - B), (0, 0)))

    num_tiles = Bp // tile_b
    grid = (num_tiles,)

    flops = 2 * Bp * (in_dims * H1 + H1 * H2 + n_act * H2 + H2)
    bytes_accessed = int(
        state.size * state.dtype.itemsize + action.size * action.dtype.itemsize
        + w1.size * 2 + w2.size * 2 + wa.size * 4
        + pack1.size * 4 + pack2.size * 4 + 4 + Bp * 4)
    cost = pl.CostEstimate(flops=flops, transcendentals=2 * Bp,
                           bytes_accessed=bytes_accessed)

    out = pl.pallas_call(
        critic_kernel,
        out_shape=jax.ShapeDtypeStruct((1, Bp), jnp.float32),
        grid=grid,
        in_specs=[
            pl.BlockSpec((tile_b, in_dims), lambda i: (i, 0)),   # state: batch-tiled
            pl.BlockSpec((tile_b, n_act), lambda i: (i, 0)),     # action: batch-tiled
            # Grid-invariant weight operands (constant index_map): fetched once,
            # VMEM-resident across the whole batch grid.
            pl.BlockSpec((in_dims, H1), lambda i: (0, 0)),       # w1 (bf16)
            pl.BlockSpec((3, H1), lambda i: (0, 0)),             # [b1; g1; be1]
            pl.BlockSpec((H1, H2), lambda i: (0, 0)),            # w2 (bf16)
            pl.BlockSpec((n_act, H2), lambda i: (0, 0)),         # wa (f32, VPU path)
            pl.BlockSpec((5, H2), lambda i: (0, 0)),             # [b2; g2; be2; ba; wc]
            pl.BlockSpec(memory_space=pltpu.MemorySpace.SMEM),   # bc scalar
        ],
        # Lane-dense output: one (1, tile_b) row per grid step.
        out_specs=pl.BlockSpec((1, tile_b), lambda i: (0, i)),
        compiler_params=pltpu.CompilerParams(
            dimension_semantics=("parallel",),
            # Fits the v7x scoped default (64 MiB physical); re-derive if
            # hidden dims / tile_b are scaled (2x batch tiles double-buffered +
            # weights + ~4 f32 (tile_b, H2) intermediates must stay under budget).
            vmem_limit_bytes=32 * 1024 * 1024,
        ),
        cost_estimate=cost,
    )(state, action, w1, pack1, w2, wa, pack2, bc)

    return out.reshape(Bp, 1)[:B]


def init_params(key, input_dims, n_actions, hidden1, hidden2):
    """Deterministic init mirroring CriticNetwork.__init__ (shapes + ranges).

    Weights stored pre-transposed (in_features, out_features); w1/w2 cast to
    bf16 for the MXU, wa stays f32 (VPU path); biases / LayerNorm params / wc
    packed into stacked f32 arrays to minimize kernel operands.
    """
    ks = jax.random.split(key, 8)
    f1 = 1.0 / jnp.sqrt(float(input_dims))   # torch code uses weight.size()[0]
    f2 = 1.0 / jnp.sqrt(float(hidden1))
    f3 = 0.003
    fa = 1.0 / jnp.sqrt(float(n_actions))    # default nn.Linear init range

    w1 = jax.random.uniform(ks[0], (input_dims, hidden1), jnp.float32, -f1, f1)
    b1 = jax.random.uniform(ks[1], (hidden1,), jnp.float32, -f1, f1)
    g1 = jnp.ones((hidden1,), jnp.float32)
    be1 = jnp.zeros((hidden1,), jnp.float32)

    w2 = jax.random.uniform(ks[2], (hidden1, hidden2), jnp.float32, -f2, f2)
    b2 = jax.random.uniform(ks[3], (hidden2,), jnp.float32, -f2, f2)
    g2 = jnp.ones((hidden2,), jnp.float32)
    be2 = jnp.zeros((hidden2,), jnp.float32)

    wa = jax.random.uniform(ks[4], (n_actions, hidden2), jnp.float32, -fa, fa)
    ba = jax.random.uniform(ks[5], (hidden2,), jnp.float32, -fa, fa)

    wc = jax.random.uniform(ks[6], (hidden2,), jnp.float32, -f3, f3)
    bc = jax.random.uniform(ks[7], (1, 1), jnp.float32, -f3, f3)

    pack1 = jnp.stack([b1, g1, be1], axis=0)           # (3, H1)
    pack2 = jnp.stack([b2, g2, be2, ba, wc], axis=0)   # (5, H2)

    return (w1.astype(jnp.bfloat16), pack1,
            w2.astype(jnp.bfloat16), wa, pack2, bc)


def reference_forward(state, action, params):
    """Pure-JAX reference using the same bf16-at-MXU / f32-elsewhere math."""
    w1, pack1, w2, wa, pack2, bc = params
    b1, g1, be1 = pack1[0:1], pack1[1:2], pack1[2:3]
    b2, g2, be2, ba, wc = pack2[0:1], pack2[1:2], pack2[2:3], pack2[3:4], pack2[4:5]

    h1 = jnp.dot(state.astype(jnp.bfloat16), w1, preferred_element_type=jnp.float32) + b1
    s = jnp.maximum(_layernorm(h1, g1, be1), 0.0)

    h2 = jnp.dot(s.astype(jnp.bfloat16), w2, preferred_element_type=jnp.float32) + b2
    s2 = _layernorm(h2, g2, be2)

    a = jnp.maximum(jnp.dot(action, wa) + ba, 0.0)
    comb = jnp.maximum(s2 + a, 0.0)
    return jnp.dot(comb, wc.T) + bc[0, 0]


if __name__ == "__main__":
    input_dims = 16
    n_actions = 4
    hidden1 = 128   # lane-dense hidden dims (full 128-lane vregs / MXU columns)
    hidden2 = 128

    key = jax.random.PRNGKey(0)
    k_params, k_data = jax.random.split(key)
    params = init_params(k_params, input_dims, n_actions, hidden1, hidden2)

    # Case 1: replay-buffer-sized batch -> two 128-row tiles (2 grid steps,
    #         v7x megacore splittable, lane-dense 128-wide output blocks).
    # Case 2: tiny ragged batch -> single full-batch tile + padding path.
    for B in (256, 20):
        ks, ka = jax.random.split(jax.random.fold_in(k_data, B))
        state = jax.random.normal(ks, (B, input_dims), jnp.float32)
        action = jax.random.normal(ka, (B, n_actions), jnp.float32)

        q = critic_forward(state, action, params)
        jax.block_until_ready(q)

        q_ref = reference_forward(state, action, params)
        assert q.shape == (B, 1), q.shape
        assert jnp.allclose(q, q_ref, atol=5e-3, rtol=5e-3), (B, q, q_ref)

    print("KERNEL_OK")
</pallas_src>

<mosaic_0001>
module attributes {stable_mosaic.version = 11 : i64} {
  func.func @critic_kernel(%arg0: i32, %arg1: memref<128x16xf32, #tpu.memory_space<vmem>>, %arg2: memref<128x4xf32, #tpu.memory_space<vmem>>, %arg3: memref<16x128xbf16, #tpu.memory_space<vmem>>, %arg4: memref<3x128xf32, #tpu.memory_space<vmem>>, %arg5: memref<128x128xbf16, #tpu.memory_space<vmem>>, %arg6: memref<4x128xf32, #tpu.memory_space<vmem>>, %arg7: memref<5x128xf32, #tpu.memory_space<vmem>>, %arg8: memref<1x1xf32, #tpu.memory_space<smem>>, %arg9: memref<1x128xf32, #tpu.memory_space<vmem>>) attributes {dimension_semantics = [#tpu.dimension_semantics<parallel>], iteration_bounds = array<i64: 2>, scalar_prefetch = 0 : i64, scratch_operands = 0 : i64, tpu.core_type = #tpu.core_type<tc>, window_params = [{transform_indices = @transform_0, window_bounds = array<i64: 128, 16>}, {transform_indices = @transform_1, window_bounds = array<i64: 128, 4>}, {pipeline_mode = #tpu.pipeline_mode<synchronous>, transform_indices = @transform_2, window_bounds = array<i64: 16, 128>}, {pipeline_mode = #tpu.pipeline_mode<synchronous>, transform_indices = @transform_3, window_bounds = array<i64: 3, 128>}, {pipeline_mode = #tpu.pipeline_mode<synchronous>, transform_indices = @transform_4, window_bounds = array<i64: 128, 128>}, {pipeline_mode = #tpu.pipeline_mode<synchronous>, transform_indices = @transform_5, window_bounds = array<i64: 4, 128>}, {pipeline_mode = #tpu.pipeline_mode<synchronous>, transform_indices = @transform_6, window_bounds = array<i64: 5, 128>}, {transform_indices = @transform_7, window_bounds = array<i64: 1, 1>}, {transform_indices = @transform_8, window_bounds = array<i64: 1, 128>}]} {
    %c0 = arith.constant 0 : index
    %c0_0 = arith.constant 0 : index
    %0 = vector.load %arg4[%c0, %c0_0] : memref<3x128xf32, #tpu.memory_space<vmem>>, vector<1x128xf32>
    %c1 = arith.constant 1 : index
    %c0_1 = arith.constant 0 : index
    %1 = vector.load %arg4[%c1, %c0_1] : memref<3x128xf32, #tpu.memory_space<vmem>>, vector<1x128xf32>
    %c2 = arith.constant 2 : index
    %c0_2 = arith.constant 0 : index
    %2 = vector.load %arg4[%c2, %c0_2] : memref<3x128xf32, #tpu.memory_space<vmem>>, vector<1x128xf32>
    %c0_3 = arith.constant 0 : index
    %c0_4 = arith.constant 0 : index
    %3 = vector.load %arg7[%c0_3, %c0_4] : memref<5x128xf32, #tpu.memory_space<vmem>>, vector<1x128xf32>
    %c1_5 = arith.constant 1 : index
    %c0_6 = arith.constant 0 : index
    %4 = vector.load %arg7[%c1_5, %c0_6] : memref<5x128xf32, #tpu.memory_space<vmem>>, vector<1x128xf32>
    %c2_7 = arith.constant 2 : index
    %c0_8 = arith.constant 0 : index
    %5 = vector.load %arg7[%c2_7, %c0_8] : memref<5x128xf32, #tpu.memory_space<vmem>>, vector<1x128xf32>
    %c3 = arith.constant 3 : index
    %c0_9 = arith.constant 0 : index
    %6 = vector.load %arg7[%c3, %c0_9] : memref<5x128xf32, #tpu.memory_space<vmem>>, vector<1x128xf32>
    %c4 = arith.constant 4 : index
    %c0_10 = arith.constant 0 : index
    %7 = vector.load %arg7[%c4, %c0_10] : memref<5x128xf32, #tpu.memory_space<vmem>>, vector<1x128xf32>
    %c0_11 = arith.constant 0 : index
    %c0_12 = arith.constant 0 : index
    %8 = memref.load %arg8[%c0_11, %c0_12] : memref<1x1xf32, #tpu.memory_space<smem>>
    %c0_13 = arith.constant 0 : index
    %c0_14 = arith.constant 0 : index
    %9 = vector.load %arg1[%c0_13, %c0_14] : memref<128x16xf32, #tpu.memory_space<vmem>>, vector<128x16xf32>
    %10 = arith.truncf %9 : vector<128x16xf32> to vector<128x16xbf16>
    %c0_15 = arith.constant 0 : index
    %c0_16 = arith.constant 0 : index
    %11 = vector.load %arg3[%c0_15, %c0_16] : memref<16x128xbf16, #tpu.memory_space<vmem>>, vector<16x128xbf16>
    %cst = arith.constant dense<0.000000e+00> : vector<128x128xf32>
    %12 = tpu.matmul %10, %11, %cst {dimension_numbers = #tpu.dot_dimension_numbers<[1], [0], [0], [1], [0, 0, 1, 1], [], []>} : vector<128x16xbf16>, vector<16x128xbf16>, vector<128x128xf32> -> vector<128x128xf32>
    %13 = vector.broadcast %0 : vector<1x128xf32> to vector<128x128xf32>
    %14 = arith.addf %12, %13 : vector<128x128xf32>
    %cst_17 = arith.constant dense<0.000000e+00> : vector<128xf32>
    %15 = vector.multi_reduction <add>, %14, %cst_17 [1] : vector<128x128xf32> to vector<128xf32>
    %16 = vector.shape_cast %15 : vector<128xf32> to vector<128x1xf32>
    %cst_18 = arith.constant 1.280000e+02 : f32
    %17 = vector.broadcast %cst_18 : f32 to vector<128x1xf32>
    %18 = arith.divf %16, %17 : vector<128x1xf32>
    %19 = vector.broadcast %18 : vector<128x1xf32> to vector<128x128xf32>
    %20 = arith.subf %14, %19 : vector<128x128xf32>
    %21 = arith.mulf %20, %20 : vector<128x128xf32>
    %cst_19 = arith.constant dense<0.000000e+00> : vector<128xf32>
    %22 = vector.multi_reduction <add>, %21, %cst_19 [1] : vector<128x128xf32> to vector<128xf32>
    %23 = vector.shape_cast %22 : vector<128xf32> to vector<128x1xf32>
    %cst_20 = arith.constant 1.280000e+02 : f32
    %24 = vector.broadcast %cst_20 : f32 to vector<128x1xf32>
    %25 = arith.divf %23, %24 : vector<128x1xf32>
    %cst_21 = arith.constant 9.99999974E-6 : f32
    %26 = vector.broadcast %cst_21 : f32 to vector<128x1xf32>
    %27 = arith.addf %25, %26 : vector<128x1xf32>
    %28 = math.rsqrt %27 : vector<128x1xf32>
    %29 = vector.broadcast %28 : vector<128x1xf32> to vector<128x128xf32>
    %30 = arith.mulf %20, %29 : vector<128x128xf32>
    %31 = vector.broadcast %1 : vector<1x128xf32> to vector<128x128xf32>
    %32 = arith.mulf %30, %31 : vector<128x128xf32>
    %33 = vector.broadcast %2 : vector<1x128xf32> to vector<128x128xf32>
    %34 = arith.addf %32, %33 : vector<128x128xf32>
    %cst_22 = arith.constant 0.000000e+00 : f32
    %35 = vector.broadcast %cst_22 : f32 to vector<128x128xf32>
    %36 = arith.maximumf %34, %35 : vector<128x128xf32>
    %37 = arith.truncf %36 : vector<128x128xf32> to vector<128x128xbf16>
    %c0_23 = arith.constant 0 : index
    %c0_24 = arith.constant 0 : index
    %38 = vector.load %arg5[%c0_23, %c0_24] : memref<128x128xbf16, #tpu.memory_space<vmem>>, vector<128x128xbf16>
    %cst_25 = arith.constant dense<0.000000e+00> : vector<128x128xf32>
    %39 = tpu.matmul %37, %38, %cst_25 {dimension_numbers = #tpu.dot_dimension_numbers<[1], [0], [0], [1], [0, 0, 1, 1], [], []>} : vector<128x128xbf16>, vector<128x128xbf16>, vector<128x128xf32> -> vector<128x128xf32>
    %40 = vector.broadcast %3 : vector<1x128xf32> to vector<128x128xf32>
    %41 = arith.addf %39, %40 : vector<128x128xf32>
    %cst_26 = arith.constant dense<0.000000e+00> : vector<128xf32>
    %42 = vector.multi_reduction <add>, %41, %cst_26 [1] : vector<128x128xf32> to vector<128xf32>
    %43 = vector.shape_cast %42 : vector<128xf32> to vector<128x1xf32>
    %cst_27 = arith.constant 1.280000e+02 : f32
    %44 = vector.broadcast %cst_27 : f32 to vector<128x1xf32>
    %45 = arith.divf %43, %44 : vector<128x1xf32>
    %46 = vector.broadcast %45 : vector<128x1xf32> to vector<128x128xf32>
    %47 = arith.subf %41, %46 : vector<128x128xf32>
    %48 = arith.mulf %47, %47 : vector<128x128xf32>
    %cst_28 = arith.constant dense<0.000000e+00> : vector<128xf32>
    %49 = vector.multi_reduction <add>, %48, %cst_28 [1] : vector<128x128xf32> to vector<128xf32>
    %50 = vector.shape_cast %49 : vector<128xf32> to vector<128x1xf32>
    %cst_29 = arith.constant 1.280000e+02 : f32
    %51 = vector.broadcast %cst_29 : f32 to vector<128x1xf32>
    %52 = arith.divf %50, %51 : vector<128x1xf32>
    %cst_30 = arith.constant 9.99999974E-6 : f32
    %53 = vector.broadcast %cst_30 : f32 to vector<128x1xf32>
    %54 = arith.addf %52, %53 : vector<128x1xf32>
    %55 = math.rsqrt %54 : vector<128x1xf32>
    %56 = vector.broadcast %55 : vector<128x1xf32> to vector<128x128xf32>
    %57 = arith.mulf %47, %56 : vector<128x128xf32>
    %58 = vector.broadcast %4 : vector<1x128xf32> to vector<128x128xf32>
    %59 = arith.mulf %57, %58 : vector<128x128xf32>
    %60 = vector.broadcast %5 : vector<1x128xf32> to vector<128x128xf32>
    %61 = arith.addf %59, %60 : vector<128x128xf32>
    %c0_31 = arith.constant 0 : index
    %c0_32 = arith.constant 0 : index
    %62 = vector.load %arg2[%c0_31, %c0_32] : memref<128x4xf32, #tpu.memory_space<vmem>>, vector<128x4xf32>
    %c0_33 = arith.constant 0 : index
    %c0_34 = arith.constant 0 : index
    %63 = vector.load %arg6[%c0_33, %c0_34] : memref<4x128xf32, #tpu.memory_space<vmem>>, vector<4x128xf32>
    %64 = vector.extract_strided_slice %62 {offsets = [0, 0], sizes = [128, 1], strides = [1, 1]} : vector<128x4xf32> to vector<128x1xf32>
    %65 = vector.extract_strided_slice %63 {offsets = [0, 0], sizes = [1, 128], strides = [1, 1]} : vector<4x128xf32> to vector<1x128xf32>
    %66 = vector.broadcast %64 : vector<128x1xf32> to vector<128x128xf32>
    %67 = vector.broadcast %65 : vector<1x128xf32> to vector<128x128xf32>
    %68 = arith.mulf %66, %67 : vector<128x128xf32>
    %69 = vector.extract_strided_slice %62 {offsets = [0, 1], sizes = [128, 1], strides = [1, 1]} : vector<128x4xf32> to vector<128x1xf32>
    %70 = vector.extract_strided_slice %63 {offsets = [1, 0], sizes = [1, 128], strides = [1, 1]} : vector<4x128xf32> to vector<1x128xf32>
    %71 = vector.broadcast %69 : vector<128x1xf32> to vector<128x128xf32>
    %72 = vector.broadcast %70 : vector<1x128xf32> to vector<128x128xf32>
    %73 = arith.mulf %71, %72 : vector<128x128xf32>
    %74 = arith.addf %68, %73 : vector<128x128xf32>
    %75 = vector.extract_strided_slice %62 {offsets = [0, 2], sizes = [128, 1], strides = [1, 1]} : vector<128x4xf32> to vector<128x1xf32>
    %76 = vector.extract_strided_slice %63 {offsets = [2, 0], sizes = [1, 128], strides = [1, 1]} : vector<4x128xf32> to vector<1x128xf32>
    %77 = vector.broadcast %75 : vector<128x1xf32> to vector<128x128xf32>
    %78 = vector.broadcast %76 : vector<1x128xf32> to vector<128x128xf32>
    %79 = arith.mulf %77, %78 : vector<128x128xf32>
    %80 = arith.addf %74, %79 : vector<128x128xf32>
    %81 = vector.extract_strided_slice %62 {offsets = [0, 3], sizes = [128, 1], strides = [1, 1]} : vector<128x4xf32> to vector<128x1xf32>
    %82 = vector.extract_strided_slice %63 {offsets = [3, 0], sizes = [1, 128], strides = [1, 1]} : vector<4x128xf32> to vector<1x128xf32>
    %83 = vector.broadcast %81 : vector<128x1xf32> to vector<128x128xf32>
    %84 = vector.broadcast %82 : vector<1x128xf32> to vector<128x128xf32>
    %85 = arith.mulf %83, %84 : vector<128x128xf32>
    %86 = arith.addf %80, %85 : vector<128x128xf32>
    %87 = vector.broadcast %6 : vector<1x128xf32> to vector<128x128xf32>
    %88 = arith.addf %86, %87 : vector<128x128xf32>
    %cst_35 = arith.constant 0.000000e+00 : f32
    %89 = vector.broadcast %cst_35 : f32 to vector<128x128xf32>
    %90 = arith.maximumf %88, %89 : vector<128x128xf32>
    %91 = arith.addf %61, %90 : vector<128x128xf32>
    %cst_36 = arith.constant 0.000000e+00 : f32
    %92 = vector.broadcast %cst_36 : f32 to vector<128x128xf32>
    %93 = arith.maximumf %91, %92 : vector<128x128xf32>
    "tpu.trace_start"() <{level = 10 : i32, message = "oh,bh->ob"}> : () -> ()
    %cst_37 = arith.constant dense<0.000000e+00> : vector<1x128xf32>
    %94 = tpu.matmul %7, %93, %cst_37 {dimension_numbers = #tpu.dot_dimension_numbers<[1], [1], [0], [0], [0, 0, 1, 0], [], []>} : vector<1x128xf32>, vector<128x128xf32>, vector<1x128xf32> -> vector<1x128xf32>
    "tpu.trace_stop"() : () -> ()
    %95 = vector.broadcast %8 : f32 to vector<1x128xf32>
    %96 = arith.addf %94, %95 : vector<1x128xf32>
    %c0_38 = arith.constant 0 : index
    %c0_39 = arith.constant 0 : index
    %97 = vector.load %arg9[%c0_38, %c0_39] : memref<1x128xf32, #tpu.memory_space<vmem>>, vector<1x128xf32>
    tpu.vector_store %arg9[%c0_38, %c0_39], %96 {strides = array<i32>} : memref<1x128xf32, #tpu.memory_space<vmem>>, vector<1x128xf32>,
    return
  }
  func.func @transform_0(%arg0: i32) -> (i32, i32) {
    %c0_i32 = arith.constant 0 : i32
    %c0_i32_0 = arith.constant 0 : i32
    return %arg0, %c0_i32 : i32, i32
  }
  func.func @transform_1(%arg0: i32) -> (i32, i32) {
    %c0_i32 = arith.constant 0 : i32
    %c0_i32_0 = arith.constant 0 : i32
    return %arg0, %c0_i32 : i32, i32
  }
  func.func @transform_2(%arg0: i32) -> (i32, i32) {
    %c0_i32 = arith.constant 0 : i32
    %c0_i32_0 = arith.constant 0 : i32
    %c0_i32_1 = arith.constant 0 : i32
    return %c0_i32, %c0_i32_0 : i32, i32
  }
  func.func @transform_3(%arg0: i32) -> (i32, i32) {
    %c0_i32 = arith.constant 0 : i32
    %c0_i32_0 = arith.constant 0 : i32
    %c0_i32_1 = arith.constant 0 : i32
    return %c0_i32, %c0_i32_0 : i32, i32
  }
  func.func @transform_4(%arg0: i32) -> (i32, i32) {
    %c0_i32 = arith.constant 0 : i32
    %c0_i32_0 = arith.constant 0 : i32
    %c0_i32_1 = arith.constant 0 : i32
    return %c0_i32, %c0_i32_0 : i32, i32
  }
  func.func @transform_5(%arg0: i32) -> (i32, i32) {
    %c0_i32 = arith.constant 0 : i32
    %c0_i32_0 = arith.constant 0 : i32
    %c0_i32_1 = arith.constant 0 : i32
    return %c0_i32, %c0_i32_0 : i32, i32
  }
  func.func @transform_6(%arg0: i32) -> (i32, i32) {
    %c0_i32 = arith.constant 0 : i32
    %c0_i32_0 = arith.constant 0 : i32
    %c0_i32_1 = arith.constant 0 : i32
    return %c0_i32, %c0_i32_0 : i32, i32
  }
  func.func @transform_7(%arg0: i32) -> (i32, i32) {
    %c0_i32 = arith.constant 0 : i32
    %c0_i32_0 = arith.constant 0 : i32
    %c0_i32_1 = arith.constant 0 : i32
    return %c0_i32, %c0_i32_0 : i32, i32
  }
  func.func @transform_8(%arg0: i32) -> (i32, i32) {
    %c0_i32 = arith.constant 0 : i32
    %c0_i32_0 = arith.constant 0 : i32
    return %c0_i32, %arg0 : i32, i32
  }
}

</mosaic_0001>

<llo_original>
// kernel: critic_forward.1
$region0: #{critic_forward.1}
  #allocation0 [shape = 'u32[]', space=smem, size = 0x4, offset = 0x4, fixed_abs, tag = 'smem constant byte address 0x4 - core index']
  #allocation1 [shape = 'u32[144,128]{1,0:T(1,128)}', space=vmem, size = 0x12000, scoped, tag = 'internal scratch']
  #allocation2 [shape = 'f32[1,1]{1,0:T(1,128)S(6)}', space=smem, size = 0x200, scoped, tag = 'scoped memory for critic_forward.1']
  %s0 = inlined_call_operand.vmem [shape: f32[256,16], index: 0, kind: input, shape index: {}]
  %s1 = inlined_call_operand.vmem [shape: f32[256,4], index: 1, kind: input, shape index: {}]
  %s2 = inlined_call_operand.vmem [shape: bf16[16,128], index: 2, kind: input, shape index: {}]
  %s3 = inlined_call_operand.vmem [shape: f32[3,128], index: 3, kind: input, shape index: {}]
  %s4 = inlined_call_operand.vmem [shape: bf16[128,128], index: 4, kind: input, shape index: {}]
  %s5 = inlined_call_operand.vmem [shape: f32[4,128], index: 5, kind: input, shape index: {}]
  %s6 = inlined_call_operand.vmem [shape: f32[5,128], index: 6, kind: input, shape index: {}]
  %s7 = inlined_call_operand.<no memory space> [shape: f32[1,1], index: 7, kind: input, shape index: {}]
  %s8 = inlined_call_operand.hbm [shape: f32[1,256], index: 8, kind: output, shape index: {}]
  %s9 = sld [smem:[#allocation0]]
  $region65: #{critic_forward.1} parent=0
    _
  %s11 = ssub.s32 1, %s9
  %s12 = scalar_select 0, %s11, %s9
  %13 = sst [smem:[#allocation2]] %s7
  $region1: #{critic_forward.1} parent=0
    #allocation3 [shape = 'u8[1024]{0}', space=vmem, size = 0x400, scoped, tag = 'output window, operand 0']
    #allocation4 [shape = 's32[2]{0}', space=sflag, size = 0x8, scoped, tag = 'scoped memory for critic_forward.1']
    %14 = vsyncpa [#allocation4], 0
    %s15 = scalar_lea.sflag [#allocation4], 1
    %16 = vsyncpa %s15, 0
    loop: start=0, step=1, limit=4
    $region2: #{critic_forward.1} parent=1 // loop_pre_header
      _
    $region3: #{critic_forward.1} parent=1 // loop_header
      %s18 = sphi 0, %s22
      %p19 = scmp.ge.s32.totalorder %s18, 4
      %s28 = sphi 0, %s30
      %s31 = sphi 0, %s28
      %s32 = sphi 0, %s31
      %s48 = sphi 0, %s32
      %s54 = sphi 0, %s56
      %s57 = sphi 0, %s54
      %s58 = sphi 0, %s57
      %s74 = sphi 0, %s58
      %s78 = sphi 0, %s78
      %s80 = sphi 0, %s78
      %s81 = sphi 0, %s80
      %s95 = sphi 0, %s81
      %s99 = sphi 0, %s99
      %s101 = sphi 0, %s99
      %s102 = sphi 0, %s101
      %s116 = sphi 0, %s102
      %s120 = sphi 0, %s120
      %s122 = sphi 0, %s120
      %s123 = sphi 0, %s122
      %s137 = sphi 0, %s123
      %s141 = sphi 0, %s141
      %s143 = sphi 0, %s141
      %s144 = sphi 0, %s143
      %s158 = sphi 0, %s144
      %s162 = sphi 0, %s162
      %s164 = sphi 0, %s162
      %s165 = sphi 0, %s164
      %s179 = sphi 0, %s165
      %s183 = sphi 0, %s183
      %s185 = sphi 0, %s183
      %s186 = sphi 0, %s185
      %s200 = sphi 0, %s186
      %s206 = sphi 0, %s208
      %s209 = sphi 0, %s206
      %s210 = sphi 0, %s209
      %s226 = sphi 0, %s210
    $region4: #{critic_forward.1} parent=1 // loop_header_branch
      %21 = sbr.rel (%p19) target = $region8
    $region5: #{critic_forward.1} parent=1 // loop_body
      %s23 = ssub.s32 %s18, 1
      %s24 = ssub.s32 %s18, 2
      %s25 = sadd.s32 %s18, 1
      %s26 = ssub.s32 %s18, %s25
      %p27 = scmp.eq.s32.totalorder %s26, 0
      %s29 = sadd.s32 %s28, 1
      %s30 = scalar_select %p27, %s28, %s29
      %p33 = pneg %p27
      %p34 = scmp.eq.s32.totalorder %s18, 1
      %p35 = por %p33, %p34
      %p36 = scmp.ne.s32.totalorder %s28, %s31
      %p37 = scmp.eq.s32.totalorder %s18, 0
      %p38 = por %p36, %p37
      %p39 = scmp.ne.s32.totalorder %s28, %s31
      %p40 = scmp.eq.s32.totalorder %s23, 1
      %p41 = por %p39, %p40
      %p42 = scmp.ne.s32.totalorder %s31, %s32
      %p43 = scmp.eq.s32.totalorder %s23, 0
      %p44 = por %p42, %p43
      %p45 = scmp.ne.s32.totalorder %s31, %s32
      %p46 = scmp.eq.s32.totalorder %s24, 1
      %p47 = por %p45, %p46
      %p49 = scmp.ne.s32.totalorder %s32, %s48
      %p50 = scmp.eq.s32.totalorder %s24, 0
      %p51 = por %p49, %p50
      %s52 = ssub.s32 %s18, %s25
      %p53 = scmp.eq.s32.totalorder %s52, 0
      %s55 = sadd.s32 %s54, 1
      %s56 = scalar_select %p53, %s54, %s55
      %p59 = pneg %p53
      %p60 = scmp.eq.s32.totalorder %s18, 1
      %p61 = por %p59, %p60
      %p62 = scmp.ne.s32.totalorder %s54, %s57
      %p63 = scmp.eq.s32.totalorder %s18, 0
      %p64 = por %p62, %p63
      %p65 = scmp.ne.s32.totalorder %s54, %s57
      %p66 = scmp.eq.s32.totalorder %s23, 1
      %p67 = por %p65, %p66
      %p68 = scmp.ne.s32.totalorder %s57, %s58
      %p69 = scmp.eq.s32.totalorder %s23, 0
      %p70 = por %p68, %p69
      %p71 = scmp.ne.s32.totalorder %s57, %s58
      %p72 = scmp.eq.s32.totalorder %s24, 1
      %p73 = por %p71, %p72
      %p75 = scmp.ne.s32.totalorder %s58, %s74
      %p76 = scmp.eq.s32.totalorder %s24, 0
      %p77 = por %p75, %p76
      %s79 = sadd.s32 %s78, 1
      %p82 = scmp.eq.s32.totalorder %s18, 1
      %p83 = scmp.ne.s32.totalorder %s78, %s80
      %p84 = scmp.eq.s32.totalorder %s18, 0
      %p85 = por %p83, %p84
      %p86 = scmp.ne.s32.totalorder %s78, %s80
      %p87 = scmp.eq.s32.totalorder %s23, 1
      %p88 = por %p86, %p87
      %p89 = scmp.ne.s32.totalorder %s80, %s81
      %p90 = scmp.eq.s32.totalorder %s23, 0
      %p91 = por %p89, %p90
      %p92 = scmp.ne.s32.totalorder %s80, %s81
      %p93 = scmp.eq.s32.totalorder %s24, 1
      %p94 = por %p92, %p93
      %p96 = scmp.ne.s32.totalorder %s81, %s95
      %p97 = scmp.eq.s32.totalorder %s24, 0
      %p98 = por %p96, %p97
      %s100 = sadd.s32 %s99, 1
      %p103 = scmp.eq.s32.totalorder %s18, 1
      %p104 = scmp.ne.s32.totalorder %s99, %s101
      %p105 = scmp.eq.s32.totalorder %s18, 0
      %p106 = por %p104, %p105
      %p107 = scmp.ne.s32.totalorder %s99, %s101
      %p108 = scmp.eq.s32.totalorder %s23, 1
      %p109 = por %p107, %p108
      %p110 = scmp.ne.s32.totalorder %s101, %s102
      %p111 = scmp.eq.s32.totalorder %s23, 0
      %p112 = por %p110, %p111
      %p113 = scmp.ne.s32.totalorder %s101, %s102
      %p114 = scmp.eq.s32.totalorder %s24, 1
      %p115 = por %p113, %p114
      %p117 = scmp.ne.s32.totalorder %s102, %s116
      %p118 = scmp.eq.s32.totalorder %s24, 0
      %p119 = por %p117, %p118
      %s121 = sadd.s32 %s120, 1
      %p124 = scmp.eq.s32.totalorder %s18, 1
      %p125 = scmp.ne.s32.totalorder %s120, %s122
      %p126 = scmp.eq.s32.totalorder %s18, 0
      %p127 = por %p125, %p126
      %p128 = scmp.ne.s32.totalorder %s120, %s122
      %p129 = scmp.eq.s32.totalorder %s23, 1
      %p130 = por %p128, %p129
      %p131 = scmp.ne.s32.totalorder %s122, %s123
      %p132 = scmp.eq.s32.totalorder %s23, 0
      %p133 = por %p131, %p132
      %p134 = scmp.ne.s32.totalorder %s122, %s123
      %p135 = scmp.eq.s32.totalorder %s24, 1
      %p136 = por %p134, %p135
      %p138 = scmp.ne.s32.totalorder %s123, %s137
      %p139 = scmp.eq.s32.totalorder %s24, 0
      %p140 = por %p138, %p139
      %s142 = sadd.s32 %s141, 1
      %p145 = scmp.eq.s32.totalorder %s18, 1
      %p146 = scmp.ne.s32.totalorder %s141, %s143
      %p147 = scmp.eq.s32.totalorder %s18, 0
      %p148 = por %p146, %p147
      %p149 = scmp.ne.s32.totalorder %s141, %s143
      %p150 = scmp.eq.s32.totalorder %s23, 1
      %p151 = por %p149, %p150
      %p152 = scmp.ne.s32.totalorder %s143, %s144
      %p153 = scmp.eq.s32.totalorder %s23, 0
      %p154 = por %p152, %p153
      %p155 = scmp.ne.s32.totalorder %s143, %s144
      %p156 = scmp.eq.s32.totalorder %s24, 1
      %p157 = por %p155, %p156
      %p159 = scmp.ne.s32.totalorder %s144, %s158
      %p160 = scmp.eq.s32.totalorder %s24, 0
      %p161 = por %p159, %p160
      %s163 = sadd.s32 %s162, 1
      %p166 = scmp.eq.s32.totalorder %s18, 1
      %p167 = scmp.ne.s32.totalorder %s162, %s164
      %p168 = scmp.eq.s32.totalorder %s18, 0
      %p169 = por %p167, %p168
      %p170 = scmp.ne.s32.totalorder %s162, %s164
      %p171 = scmp.eq.s32.totalorder %s23, 1
      %p172 = por %p170, %p171
      %p173 = scmp.ne.s32.totalorder %s164, %s165
      %p174 = scmp.eq.s32.totalorder %s23, 0
      %p175 = por %p173, %p174
      %p176 = scmp.ne.s32.totalorder %s164, %s165
      %p177 = scmp.eq.s32.totalorder %s24, 1
      %p178 = por %p176, %p177
      %p180 = scmp.ne.s32.totalorder %s165, %s179
      %p181 = scmp.eq.s32.totalorder %s24, 0
      %p182 = por %p180, %p181
      %s184 = sadd.s32 %s183, 1
      %p187 = scmp.eq.s32.totalorder %s18, 1
      %p188 = scmp.ne.s32.totalorder %s183, %s185
      %p189 = scmp.eq.s32.totalorder %s18, 0
      %p190 = por %p188, %p189
      %p191 = scmp.ne.s32.totalorder %s183, %s185
      %p192 = scmp.eq.s32.totalorder %s23, 1
      %p193 = por %p191, %p192
      %p194 = scmp.ne.s32.totalorder %s185, %s186
      %p195 = scmp.eq.s32.totalorder %s23, 0
      %p196 = por %p194, %p195
      %p197 = scmp.ne.s32.totalorder %s185, %s186
      %p198 = scmp.eq.s32.totalorder %s24, 1
      %p199 = por %p197, %p198
      %p201 = scmp.ne.s32.totalorder %s186, %s200
      %p202 = scmp.eq.s32.totalorder %s24, 0
      %p203 = por %p201, %p202
      %s204 = ssub.s32 %s18, %s25
      %p205 = scmp.eq.s32.totalorder %s204, 0
      %s207 = sadd.s32 %s206, 1
      %s208 = scalar_select %p205, %s206, %s207
      %p211 = pneg %p205
      %p212 = scmp.eq.s32.totalorder %s18, 1
      %p213 = por %p211, %p212
      %p214 = scmp.ne.s32.totalorder %s206, %s209
      %p215 = scmp.eq.s32.totalorder %s18, 0
      %p216 = por %p214, %p215
      %p217 = scmp.ne.s32.totalorder %s206, %s209
      %p218 = scmp.eq.s32.totalorder %s23, 1
      %p219 = por %p217, %p218
      %p220 = scmp.ne.s32.totalorder %s209, %s210
      %p221 = scmp.eq.s32.totalorder %s23, 0
      %p222 = por %p220, %p221
      %p223 = scmp.ne.s32.totalorder %s209, %s210
      %p224 = scmp.eq.s32.totalorder %s24, 1
      %p225 = por %p223, %p224
      %p227 = scmp.ne.s32.totalorder %s210, %s226
      %p228 = scmp.eq.s32.totalorder %s24, 0
      %p229 = por %p227, %p228
      %p230 = scmp.le.s32.totalorder 1, %s18
      %p231 = scmp.lt.s32.totalorder %s18, 3
      %p232 = pnand %p230, %p231
      %p233 = pneg %p232
      // Predicated region
      $region9: #{critic_forward.1} parent=5 // pred_check
        _
      $region10: #{critic_forward.1} parent=5 // pred_check_branch
        %235 = sbr.rel (%p232) target = $region12
      $region11: #{critic_forward.1} parent=5 // pred_region
        %s236 = ssub.s32 %s18, 1
        // Predicated region
        $region13: #{critic_forward.1} parent=11 // pred_check
          %p237 = pneg %p91
        $region14: #{critic_forward.1} parent=11 // pred_check_branch
          %239 = sbr.rel (%p237) target = $region16
        $region15: #{critic_forward.1} parent=11 // pred_region
          _
        $region16: #{critic_forward.1} parent=11 // pred_fallthru
          _
        // Predicated region
        $region17: #{critic_forward.1} parent=11 // pred_check
          %p240 = pneg %p112
        $region18: #{critic_forward.1} parent=11 // pred_check_branch
          %242 = sbr.rel (%p240) target = $region20
        $region19: #{critic_forward.1} parent=11 // pred_region
          _
        $region20: #{critic_forward.1} parent=11 // pred_fallthru
          _
        // Predicated region
        $region21: #{critic_forward.1} parent=11 // pred_check
          %p243 = pneg %p133
        $region22: #{critic_forward.1} parent=11 // pred_check_branch
          %245 = sbr.rel (%p243) target = $region24
        $region23: #{critic_forward.1} parent=11 // pred_region
          _
        $region24: #{critic_forward.1} parent=11 // pred_fallthru
          _
        // Predicated region
        $region25: #{critic_forward.1} parent=11 // pred_check
          %p246 = pneg %p154
        $region26: #{critic_forward.1} parent=11 // pred_check_branch
          %248 = sbr.rel (%p246) target = $region28
        $region27: #{critic_forward.1} parent=11 // pred_region
          _
        $region28: #{critic_forward.1} parent=11 // pred_fallthru
          _
        // Predicated region
        $region29: #{critic_forward.1} parent=11 // pred_check
          %p249 = pneg %p175
        $region30: #{critic_forward.1} parent=11 // pred_check_branch
          %251 = sbr.rel (%p249) target = $region32
        $region31: #{critic_forward.1} parent=11 // pred_region
          _
        $region32: #{critic_forward.1} parent=11 // pred_fallthru
          _
        // Predicated region
        $region33: #{critic_forward.1} parent=11 // pred_check
          %p252 = pneg %p196
        $region34: #{critic_forward.1} parent=11 // pred_check_branch
          %254 = sbr.rel (%p252) target = $region36
        $region35: #{critic_forward.1} parent=11 // pred_region
          _
        $region36: #{critic_forward.1} parent=11 // pred_fallthru
          _
      $region12: #{critic_forward.1} parent=5 // pred_fallthru
        _
      %p255 = scmp.lt.s32.totalorder %s18, 2
      // Predicated region
      $region37: #{critic_forward.1} parent=5 // pred_check
        %p256 = pneg %p255
      $region38: #{critic_forward.1} parent=5 // pred_check_branch
        %258 = sbr.rel (%p256) target = $region40
      $region39: #{critic_forward.1} parent=5 // pred_region
        // Predicated region
        $region41: #{critic_forward.1} parent=39 // pred_check
          %p259 = pneg %p38
        $region42: #{critic_forward.1} parent=39 // pred_check_branch
          %261 = sbr.rel (%p259) target = $region44
        $region43: #{critic_forward.1} parent=39 // pred_region
          %s262 = smul.u32 16, %s18
          %p263 = scmp.lt.s32.totalorder %s262, 31
          %s264 = scalar_select %p263, %s262, 31
          %s265 = smul.addr %s264, 8
          %s266 = scalar_lea.vmem %s0, %s265
          %s267 = smul.u32 16, %s18
        $region44: #{critic_forward.1} parent=39 // pred_fallthru
          _
        // Predicated region
        $region45: #{critic_forward.1} parent=39 // pred_check
          %p268 = pneg %p64
        $region46: #{critic_forward.1} parent=39 // pred_check_branch
          %270 = sbr.rel (%p268) target = $region48
        $region47: #{critic_forward.1} parent=39 // pred_region
          %s271 = smul.u32 16, %s18
          %p272 = scmp.lt.s32.totalorder %s271, 31
          %s273 = scalar_select %p272, %s271, 31
          %s274 = smul.addr %s273, 8
          %s275 = scalar_lea.vmem %s1, %s274
          %s276 = smul.u32 16, %s18
        $region48: #{critic_forward.1} parent=39 // pred_fallthru
          _
      $region40: #{critic_forward.1} parent=5 // pred_fallthru
        _
      %p277 = scmp.le.s32.totalorder 1, %s18
      %p278 = scmp.lt.s32.totalorder %s18, 3
      %p279 = pnand %p277, %p278
      %p280 = pneg %p279
      // Predicated region
      $region49: #{critic_forward.1} parent=5 // pred_check
        _
      $region50: #{critic_forward.1} parent=5 // pred_check_branch
        %282 = sbr.rel (%p279) target = $region52
      $region51: #{critic_forward.1} parent=5 // pred_region
        %s283 = ssub.s32 %s18, 1
        %s284 = smul.u32 16, %s23
        %p285 = scmp.lt.s32.totalorder %s284, 31
        %s286 = scalar_select %p285, %s284, 31
        %s287 = smul.addr %s286, 8
        %s288 = scalar_lea.vmem %s0, %s287
        %p289 = pneg %p44
        %p290 = pneg %p41
        %s291 = smul.u32 16, %s23
        %p292 = scmp.lt.s32.totalorder %s291, 31
        %s293 = scalar_select %p292, %s291, 31
        %s294 = smul.addr %s293, 8
        %s295 = scalar_lea.vmem %s1, %s294
        %p296 = pneg %p70
        %p297 = pneg %p67
        %p298 = pneg %p91
        %p299 = pneg %p88
        %p300 = pneg %p112
        %p301 = pneg %p109
        %p302 = pneg %p133
        %p303 = pneg %p130
        %p304 = pneg %p154
        %p305 = pneg %p151
        %p306 = pneg %p175
        %p307 = pneg %p172
        %p308 = pneg %p196
        %p309 = pneg %p193
        %p310 = pneg %p222
        %p311 = pneg %p219
        %s312 = sand.u32 %s209, 1
        %s313 = scalar_lea.sflag [#allocation4], %s312
        %s314 = sand.u32 %s209, 1
        %s315 = scalar_lea.vmem [#allocation3], %s314
        %s316 = smul.u32 16, %s23
        %p317 = scmp.lt.s32.totalorder %s316, 31
        %s318 = scalar_select %p317, %s316, 31
        %s319 = smul.addr %s318, 8
        %s320 = scalar_lea.vmem %s0, %s319
        %s321 = smul.u32 16, %s23
        %s322 = smul.u32 16, %s23
        %p323 = scmp.lt.s32.totalorder %s322, 31
        %s324 = scalar_select %p323, %s322, 31
        %s325 = smul.addr %s324, 8
        %s326 = scalar_lea.vmem %s1, %s325
        %s327 = smul.u32 16, %s23
        %v329 = vld [vmem:[%s3] sm:$0x1]
        %v330 = vld [vmem:[%s3 + $0x1] sm:$0x1]
        %v331 = vld [vmem:[%s3 + $0x2] sm:$0x1]
        %v332 = vld [vmem:[%s6] sm:$0x1]
        %v333 = vld [vmem:[%s6 + $0x1] sm:$0x1]
        %v334 = vld [vmem:[%s6 + $0x2] sm:$0x1]
        %v335 = vld [vmem:[%s6 + $0x3] sm:$0x1]
        %v336 = vld [vmem:[%s6 + $0x4] sm:$0x1]
        %s337 = sld [smem:[#allocation2]]
        %v338 = vld [vmem:[%s320] sm:$0xff]
        %v339 = vld [vmem:[%s320 + $0x8] sm:$0xff]
        %v340 = vld [vmem:[%s320 + $0x10] sm:$0xff]
        %v341 = vld [vmem:[%s320 + $0x18] sm:$0xff]
        %v342 = vld [vmem:[%s320 + $0x20] sm:$0xff]
        %v343 = vld [vmem:[%s320 + $0x28] sm:$0xff]
        %v344 = vld [vmem:[%s320 + $0x30] sm:$0xff]
        %v345 = vld [vmem:[%s320 + $0x38] sm:$0xff]
        %v346 = vld [vmem:[%s320 + $0x40] sm:$0xff]
        %v347 = vld [vmem:[%s320 + $0x48] sm:$0xff]
        %v348 = vld [vmem:[%s320 + $0x50] sm:$0xff]
        %v349 = vld [vmem:[%s320 + $0x58] sm:$0xff]
        %v350 = vld [vmem:[%s320 + $0x60] sm:$0xff]
        %v351 = vld [vmem:[%s320 + $0x68] sm:$0xff]
        %v352 = vld [vmem:[%s320 + $0x70] sm:$0xff]
        %v353 = vld [vmem:[%s320 + $0x78] sm:$0xff]
        %v354 = vpack.c.bf16 %v339, %v338
        %v355 = vpack.c.bf16 %v341, %v340
        %v356 = vpack.c.bf16 %v343, %v342
        %v357 = vpack.c.bf16 %v345, %v344
        %v358 = vpack.c.bf16 %v347, %v346
        %v359 = vpack.c.bf16 %v349, %v348
        %v360 = vpack.c.bf16 %v351, %v350
        %v361 = vpack.c.bf16 %v353, %v352
        %v362 = vld [vmem:[%s2] sm:$0xf]
        %v363 = vld [vmem:[%s2 + $0x4] sm:$0xf]
        %v364 = vlaneseq
        %v365 = vshrl.u32 %v364, 7
        %v366 = vsub.s32 0, %v365
        %v367 = vrot.slane %v329, %v366
        %v370 = vunpack.c.l.b16 %v362
        %v371 = vunpack.c.l.b16 %v363
        %v372 = vpack.c.b16 %v371, %v370
        %vm374 = vcmask 130048
        %v376 = vsel %vm374, %v354, 0
        %v379 = vsel %vm374, %v355, 0
        %v382 = vsel %vm374, %v356, 0
        %v385 = vsel %vm374, %v357, 0
        %v388 = vsel %vm374, %v358, 0
        %v391 = vsel %vm374, %v359, 0
        %v394 = vsel %vm374, %v360, 0
        %v397 = vsel %vm374, %v361, 0
        %399 = vmatprep.subr.bf16.mxu0 0
        %400 = vmatpush1.bf16.msra.mxu0 %v372
        %401 = vmatprep.subr.bf16.mxu0 0
        %402 = vmatpush1.bf16.msra.mxu0 0
        %403 = vmatprep.subr.bf16.mxu0 0
        %404 = vmatpush1.bf16.msra.mxu0 0
        %405 = vmatprep.subr.bf16.mxu0 0
        %406 = vmatpush1.bf16.msra.mxu0 0
        %407 = vmatprep.subr.bf16.mxu0 0
        %408 = vmatpush1.bf16.msra.mxu0 0
        %409 = vmatprep.subr.bf16.mxu0 0
        %410 = vmatpush1.bf16.msra.mxu0 0
        %411 = vmatprep.subr.bf16.mxu0 0
        %412 = vmatpush1.bf16.msra.mxu0 0
        %413 = vmatprep.subr.bf16.mxu0 0
        %414 = vmatpush1.bf16.msra.mxu0 0
        %415 = vmatprep.subr.bf16.mxu0 0
        %416 = vmatpush1.bf16.msra.mxu0 0
        %417 = vmatprep.subr.bf16.mxu0 0
        %418 = vmatpush1.bf16.msra.mxu0 0
        %419 = vmatprep.subr.bf16.mxu0 0
        %420 = vmatpush1.bf16.msra.mxu0 0
        %421 = vmatprep.subr.bf16.mxu0 0
        %422 = vmatpush1.bf16.msra.mxu0 0
        %423 = vmatprep.subr.bf16.mxu0 0
        %424 = vmatpush1.bf16.msra.mxu0 0
        %425 = vmatprep.subr.bf16.mxu0 0
        %426 = vmatpush1.bf16.msra.mxu0 0
        %427 = vmatprep.subr.bf16.mxu0 0
        %428 = vmatpush1.bf16.msra.mxu0 0
        %429 = vmatprep.subr.bf16.mxu0 0
        %430 = vmatpush1.bf16.msra.mxu0 0
        %431 = vmatprep.mubr.bf16.mxu0 0
        %432 = vmatmul.mubr.bf16.gmra.mrb[0].mxu0 %v376
        %v433 = vpop.f32.mrb[0].mxu0
        %v434 = vadd.f32 %v367, %v433
        %v435 = vpop.f32.mrb[0].mxu0
        %v436 = vpop.f32.mrb[0].mxu0
        %v437 = vadd.f32 %v367, %v436
        %v438 = vpop.f32.mrb[0].mxu0
        %439 = vmatprep.mubr.bf16.mxu0 0
        %440 = vmatmul.mubr.bf16.gmra.mrb[0].mxu0 %v379
        %v441 = vpop.f32.mrb[0].mxu0
        %v442 = vadd.f32 %v367, %v441
        %v443 = vpop.f32.mrb[0].mxu0
        %v444 = vpop.f32.mrb[0].mxu0
        %v445 = vadd.f32 %v367, %v444
        %v446 = vpop.f32.mrb[0].mxu0
        %447 = vmatprep.mubr.bf16.mxu0 0
        %448 = vmatmul.mubr.bf16.gmra.mrb[0].mxu0 %v382
        %v449 = vpop.f32.mrb[0].mxu0
        %v450 = vadd.f32 %v367, %v449
        %v451 = vpop.f32.mrb[0].mxu0
        %v452 = vpop.f32.mrb[0].mxu0
        %v453 = vadd.f32 %v367, %v452
        %v454 = vpop.f32.mrb[0].mxu0
        %455 = vmatprep.mubr.bf16.mxu0 0
        %456 = vmatmul.mubr.bf16.gmra.mrb[0].mxu0 %v385
        %v457 = vpop.f32.mrb[0].mxu0
        %v458 = vadd.f32 %v367, %v457
        %v459 = vpop.f32.mrb[0].mxu0
        %v460 = vpop.f32.mrb[0].mxu0
        %v461 = vadd.f32 %v367, %v460
        %v462 = vpop.f32.mrb[0].mxu0
        %463 = vmatprep.mubr.bf16.mxu0 0
        %464 = vmatmul.mubr.bf16.gmra.mrb[0].mxu0 %v388
        %v465 = vpop.f32.mrb[0].mxu0
        %v466 = vadd.f32 %v367, %v465
        %v467 = vpop.f32.mrb[0].mxu0
        %v468 = vpop.f32.mrb[0].mxu0
        %v469 = vadd.f32 %v367, %v468
        %v470 = vpop.f32.mrb[0].mxu0
        %471 = vmatprep.mubr.bf16.mxu0 0
        %472 = vmatmul.mubr.bf16.gmra.mrb[0].mxu0 %v391
        %v473 = vpop.f32.mrb[0].mxu0
        %v474 = vadd.f32 %v367, %v473
        %v475 = vpop.f32.mrb[0].mxu0
        %v476 = vpop.f32.mrb[0].mxu0
        %v477 = vadd.f32 %v367, %v476
        %v478 = vpop.f32.mrb[0].mxu0
        %479 = vmatprep.mubr.bf16.mxu0 0
        %480 = vmatmul.mubr.bf16.gmra.mrb[0].mxu0 %v394
        %v481 = vpop.f32.mrb[0].mxu0
        %v482 = vadd.f32 %v367, %v481
        %v483 = vpop.f32.mrb[0].mxu0
        %v484 = vpop.f32.mrb[0].mxu0
        %v485 = vadd.f32 %v367, %v484
        %v486 = vpop.f32.mrb[0].mxu0
        %487 = vmatprep.mubr.bf16.mxu0 0
        %488 = vmatmul.mubr.bf16.gmra.mrb[0].mxu0 %v397
        %v489 = vpop.f32.mrb[0].mxu0
        %v490 = vadd.f32 %v367, %v489
        %v491 = vpop.f32.mrb[0].mxu0
        %v492 = vpop.f32.mrb[0].mxu0
        %v493 = vadd.f32 %v367, %v492
        %v494 = vpop.f32.mrb[0].mxu0
        %495 = vdwg.mxu0
        %496 = vadd.xlane.f32.xlu0 %v434
        %v497 = vpop.xlane.xlu0 %496
        %498 = vadd.xlane.f32.xlu0 %v437
        %v499 = vpop.xlane.xlu0 %498
        %500 = vadd.xlane.f32.xlu0 %v442
        %v501 = vpop.xlane.xlu0 %500
        %502 = vadd.xlane.f32.xlu0 %v445
        %v503 = vpop.xlane.xlu0 %502
        %504 = vadd.xlane.f32.xlu0 %v450
        %v505 = vpop.xlane.xlu0 %504
        %506 = vadd.xlane.f32.xlu0 %v453
        %v507 = vpop.xlane.xlu0 %506
        %508 = vadd.xlane.f32.xlu0 %v458
        %v509 = vpop.xlane.xlu0 %508
        %510 = vadd.xlane.f32.xlu0 %v461
        %v511 = vpop.xlane.xlu0 %510
        %512 = vadd.xlane.f32.xlu0 %v466
        %v513 = vpop.xlane.xlu0 %512
        %514 = vadd.xlane.f32.xlu0 %v469
        %v515 = vpop.xlane.xlu0 %514
        %516 = vadd.xlane.f32.xlu0 %v474
        %v517 = vpop.xlane.xlu0 %516
        %518 = vadd.xlane.f32.xlu0 %v477
        %v519 = vpop.xlane.xlu0 %518
        %520 = vadd.xlane.f32.xlu0 %v482
        %v521 = vpop.xlane.xlu0 %520
        %522 = vadd.xlane.f32.xlu0 %v485
        %v523 = vpop.xlane.xlu0 %522
        %524 = vadd.xlane.f32.xlu0 %v490
        %v525 = vpop.xlane.xlu0 %524
        %526 = vadd.xlane.f32.xlu0 %v493
        %v527 = vpop.xlane.xlu0 %526
        %v528 = vrcp.pop 128.0
        %v529 = vmul.f32 %v497, %v528
        %v530 = vmul.f32 %v499, %v528
        %v531 = vmul.f32 %v501, %v528
        %v532 = vmul.f32 %v503, %v528
        %v533 = vmul.f32 %v505, %v528
        %v534 = vmul.f32 %v507, %v528
        %v535 = vmul.f32 %v509, %v528
        %v536 = vmul.f32 %v511, %v528
        %v537 = vmul.f32 %v513, %v528
        %v538 = vmul.f32 %v515, %v528
        %v539 = vmul.f32 %v517, %v528
        %v540 = vmul.f32 %v519, %v528
        %v541 = vmul.f32 %v521, %v528
        %v542 = vmul.f32 %v523, %v528
        %v543 = vmul.f32 %v525, %v528
        %v544 = vmul.f32 %v527, %v528
        %v545 = vsub.f32 %v434, %v529
        %v546 = vsub.f32 %v437, %v530
        %v547 = vsub.f32 %v442, %v531
        %v548 = vsub.f32 %v445, %v532
        %v549 = vsub.f32 %v450, %v533
        %v550 = vsub.f32 %v453, %v534
        %v551 = vsub.f32 %v458, %v535
        %v552 = vsub.f32 %v461, %v536
        %v553 = vsub.f32 %v466, %v537
        %v554 = vsub.f32 %v469, %v538
        %v555 = vsub.f32 %v474, %v539
        %v556 = vsub.f32 %v477, %v540
        %v557 = vsub.f32 %v482, %v541
        %v558 = vsub.f32 %v485, %v542
        %v559 = vsub.f32 %v490, %v543
        %v560 = vsub.f32 %v493, %v544
        %v561 = vmul.f32 %v545, %v545
        %v562 = vmul.f32 %v546, %v546
        %v563 = vmul.f32 %v547, %v547
        %v564 = vmul.f32 %v548, %v548
        %v565 = vmul.f32 %v549, %v549
        %v566 = vmul.f32 %v550, %v550
        %v567 = vmul.f32 %v551, %v551
        %v568 = vmul.f32 %v552, %v552
        %v569 = vmul.f32 %v553, %v553
        %v570 = vmul.f32 %v554, %v554
        %v571 = vmul.f32 %v555, %v555
        %v572 = vmul.f32 %v556, %v556
        %v573 = vmul.f32 %v557, %v557
        %v574 = vmul.f32 %v558, %v558
        %v575 = vmul.f32 %v559, %v559
        %v576 = vmul.f32 %v560, %v560
        %577 = vadd.xlane.f32.xlu0 %v561
        %v578 = vpop.xlane.xlu0 %577
        %579 = vadd.xlane.f32.xlu0 %v562
        %v580 = vpop.xlane.xlu0 %579
        %581 = vadd.xlane.f32.xlu0 %v563
        %v582 = vpop.xlane.xlu0 %581
        %583 = vadd.xlane.f32.xlu0 %v564
        %v584 = vpop.xlane.xlu0 %583
        %585 = vadd.xlane.f32.xlu0 %v565
        %v586 = vpop.xlane.xlu0 %585
        %587 = vadd.xlane.f32.xlu0 %v566
        %v588 = vpop.xlane.xlu0 %587
        %589 = vadd.xlane.f32.xlu0 %v567
        %v590 = vpop.xlane.xlu0 %589
        %591 = vadd.xlane.f32.xlu0 %v568
        %v592 = vpop.xlane.xlu0 %591
        %593 = vadd.xlane.f32.xlu0 %v569
        %v594 = vpop.xlane.xlu0 %593
        %595 = vadd.xlane.f32.xlu0 %v570
        %v596 = vpop.xlane.xlu0 %595
        %597 = vadd.xlane.f32.xlu0 %v571
        %v598 = vpop.xlane.xlu0 %597
        %599 = vadd.xlane.f32.xlu0 %v572
        %v600 = vpop.xlane.xlu0 %599
        %601 = vadd.xlane.f32.xlu0 %v573
        %v602 = vpop.xlane.xlu0 %601
        %603 = vadd.xlane.f32.xlu0 %v574
        %v604 = vpop.xlane.xlu0 %603
        %605 = vadd.xlane.f32.xlu0 %v575
        %v606 = vpop.xlane.xlu0 %605
        %607 = vadd.xlane.f32.xlu0 %v576
        %v608 = vpop.xlane.xlu0 %607
        %v609 = vmul.f32 %v578, %v528
        %v610 = vmul.f32 %v580, %v528
        %v611 = vmul.f32 %v582, %v528
        %v612 = vmul.f32 %v584, %v528
        %v613 = vmul.f32 %v586, %v528
        %v614 = vmul.f32 %v588, %v528
        %v615 = vmul.f32 %v590, %v528
        %v616 = vmul.f32 %v592, %v528
        %v617 = vmul.f32 %v594, %v528
        %v618 = vmul.f32 %v596, %v528
        %v619 = vmul.f32 %v598, %v528
        %v620 = vmul.f32 %v600, %v528
        %v621 = vmul.f32 %v602, %v528
        %v622 = vmul.f32 %v604, %v528
        %v623 = vmul.f32 %v606, %v528
        %v624 = vmul.f32 %v608, %v528
        %v625 = vadd.f32 %v609, 1e-05
        %v626 = vadd.f32 %v610, 1e-05
        %v627 = vadd.f32 %v611, 1e-05
        %v628 = vadd.f32 %v612, 1e-05
        %v629 = vadd.f32 %v613, 1e-05
        %v630 = vadd.f32 %v614, 1e-05
        %v631 = vadd.f32 %v615, 1e-05
        %v632 = vadd.f32 %v616, 1e-05
        %v633 = vadd.f32 %v617, 1e-05
        %v634 = vadd.f32 %v618, 1e-05
        %v635 = vadd.f32 %v619, 1e-05
        %v636 = vadd.f32 %v620, 1e-05
        %v637 = vadd.f32 %v621, 1e-05
        %v638 = vadd.f32 %v622, 1e-05
        %v639 = vadd.f32 %v623, 1e-05
        %v640 = vadd.f32 %v624, 1e-05
        %v641 = vrsqrt.pop %v625
        %v642 = vrsqrt.pop %v626
        %v643 = vrsqrt.pop %v627
        %v644 = vrsqrt.pop %v628
        %v645 = vrsqrt.pop %v629
        %v646 = vrsqrt.pop %v630
        %v647 = vrsqrt.pop %v631
        %v648 = vrsqrt.pop %v632
        %v649 = vrsqrt.pop %v633
        %v650 = vrsqrt.pop %v634
        %v651 = vrsqrt.pop %v635
        %v652 = vrsqrt.pop %v636
        %v653 = vrsqrt.pop %v637
        %v654 = vrsqrt.pop %v638
        %v655 = vrsqrt.pop %v639
        %v656 = vrsqrt.pop %v640
        %v657 = vmul.f32 %v545, %v641
        %v658 = vmul.f32 %v546, %v642
        %v659 = vmul.f32 %v547, %v643
        %v660 = vmul.f32 %v548, %v644
        %v661 = vmul.f32 %v549, %v645
        %v662 = vmul.f32 %v550, %v646
        %v663 = vmul.f32 %v551, %v647
        %v664 = vmul.f32 %v552, %v648
        %v665 = vmul.f32 %v553, %v649
        %v666 = vmul.f32 %v554, %v650
        %v667 = vmul.f32 %v555, %v651
        %v668 = vmul.f32 %v556, %v652
        %v669 = vmul.f32 %v557, %v653
        %v670 = vmul.f32 %v558, %v654
        %v671 = vmul.f32 %v559, %v655
        %v672 = vmul.f32 %v560, %v656
        %v673 = vlaneseq
        %v674 = vshrl.u32 %v673, 7
        %v675 = vsub.s32 0, %v674
        %v676 = vrot.slane %v330, %v675
        %v677 = vmul.f32 %v657, %v676
        %v678 = vmul.f32 %v658, %v676
        %v679 = vmul.f32 %v659, %v676
        %v680 = vmul.f32 %v660, %v676
        %v681 = vmul.f32 %v661, %v676
        %v682 = vmul.f32 %v662, %v676
        %v683 = vmul.f32 %v663, %v676
        %v684 = vmul.f32 %v664, %v676
        %v685 = vmul.f32 %v665, %v676
        %v686 = vmul.f32 %v666, %v676
        %v687 = vmul.f32 %v667, %v676
        %v688 = vmul.f32 %v668, %v676
        %v689 = vmul.f32 %v669, %v676
        %v690 = vmul.f32 %v670, %v676
        %v691 = vmul.f32 %v671, %v676
        %v692 = vmul.f32 %v672, %v676
        %v693 = vlaneseq
        %v694 = vshrl.u32 %v693, 7
        %v695 = vsub.s32 0, %v694
        %v696 = vrot.slane %v331, %v695
        %v697 = vadd.f32 %v677, %v696
        %v698 = vadd.f32 %v678, %v696
        %v699 = vadd.f32 %v679, %v696
        %v700 = vadd.f32 %v680, %v696
        %v701 = vadd.f32 %v681, %v696
        %v702 = vadd.f32 %v682, %v696
        %v703 = vadd.f32 %v683, %v696
        %v704 = vadd.f32 %v684, %v696
        %v705 = vadd.f32 %v685, %v696
        %v706 = vadd.f32 %v686, %v696
        %v707 = vadd.f32 %v687, %v696
        %v708 = vadd.f32 %v688, %v696
        %v709 = vadd.f32 %v689, %v696
        %v710 = vadd.f32 %v690, %v696
        %v711 = vadd.f32 %v691, %v696
        %v712 = vadd.f32 %v692, %v696
        %v713 = vmax.f32 %v697, 0.0
        %v714 = vmax.f32 %v698, 0.0
        %v715 = vmax.f32 %v699, 0.0
        %v716 = vmax.f32 %v700, 0.0
        %v717 = vmax.f32 %v701, 0.0
        %v718 = vmax.f32 %v702, 0.0
        %v719 = vmax.f32 %v703, 0.0
        %v720 = vmax.f32 %v704, 0.0
        %v721 = vmax.f32 %v705, 0.0
        %v722 = vmax.f32 %v706, 0.0
        %v723 = vmax.f32 %v707, 0.0
        %v724 = vmax.f32 %v708, 0.0
        %v725 = vmax.f32 %v709, 0.0
        %v726 = vmax.f32 %v710, 0.0
        %v727 = vmax.f32 %v711, 0.0
        %v728 = vmax.f32 %v712, 0.0
        %v729 = vpack.c.bf16 %v714, %v713
        %v730 = vpack.c.bf16 %v716, %v715
        %v731 = vpack.c.bf16 %v718, %v717
        %v732 = vpack.c.bf16 %v720, %v719
        %v733 = vpack.c.bf16 %v722, %v721
        %v734 = vpack.c.bf16 %v724, %v723
        %v735 = vpack.c.bf16 %v726, %v725
        %v736 = vpack.c.bf16 %v728, %v727
        %v737 = vld [vmem:[%s4] sm:$0xf]
        %v738 = vld [vmem:[%s4 + $0x4] sm:$0xf]
        %v739 = vld [vmem:[%s4 + $0x8] sm:$0xf]
        %v740 = vld [vmem:[%s4 + $0xc] sm:$0xf]
        %v741 = vld [vmem:[%s4 + $0x10] sm:$0xf]
        %v742 = vld [vmem:[%s4 + $0x14] sm:$0xf]
        %v743 = vld [vmem:[%s4 + $0x18] sm:$0xf]
        %v744 = vld [vmem:[%s4 + $0x1c] sm:$0xf]
        %v745 = vld [vmem:[%s4 + $0x20] sm:$0xf]
        %v746 = vld [vmem:[%s4 + $0x24] sm:$0xf]
        %v747 = vld [vmem:[%s4 + $0x28] sm:$0xf]
        %v748 = vld [vmem:[%s4 + $0x2c] sm:$0xf]
        %v749 = vld [vmem:[%s4 + $0x30] sm:$0xf]
        %v750 = vld [vmem:[%s4 + $0x34] sm:$0xf]
        %v751 = vld [vmem:[%s4 + $0x38] sm:$0xf]
        %v752 = vld [vmem:[%s4 + $0x3c] sm:$0xf]
        %v753 = vlaneseq
        %v754 = vshrl.u32 %v753, 7
        %v755 = vsub.s32 0, %v754
        %v756 = vrot.slane %v332, %v755
        %v773 = vunpack.c.l.b16 %v737
        %v774 = vunpack.c.l.b16 %v738
        %v775 = vunpack.c.l.b16 %v739
        %v776 = vunpack.c.l.b16 %v740
        %v777 = vunpack.c.l.b16 %v741
        %v778 = vunpack.c.l.b16 %v742
        %v779 = vunpack.c.l.b16 %v743
        %v780 = vunpack.c.l.b16 %v744
        %v781 = vunpack.c.l.b16 %v745
        %v782 = vunpack.c.l.b16 %v746
        %v783 = vunpack.c.l.b16 %v747
        %v784 = vunpack.c.l.b16 %v748
        %v785 = vunpack.c.l.b16 %v749
        %v786 = vunpack.c.l.b16 %v750
        %v787 = vunpack.c.l.b16 %v751
        %v788 = vunpack.c.l.b16 %v752
        %v789 = vpack.c.b16 %v774, %v773
        %v790 = vpack.c.b16 %v776, %v775
        %v791 = vpack.c.b16 %v778, %v777
        %v792 = vpack.c.b16 %v780, %v779
        %v793 = vpack.c.b16 %v782, %v781
        %v794 = vpack.c.b16 %v784, %v783
        %v795 = vpack.c.b16 %v786, %v785
        %v796 = vpack.c.b16 %v788, %v787
        %805 = vmatprep.subr.bf16.mxu0 0
        %806 = vmatpush1.bf16.msra.mxu0 %v789
        %807 = vmatprep.subr.bf16.mxu0 0
        %808 = vmatpush1.bf16.msra.mxu0 %v790
        %809 = vmatprep.subr.bf16.mxu0 0
        %810 = vmatpush1.bf16.msra.mxu0 %v791
        %811 = vmatprep.subr.bf16.mxu0 0
        %812 = vmatpush1.bf16.msra.mxu0 %v792
        %813 = vmatprep.subr.bf16.mxu0 0
        %814 = vmatpush1.bf16.msra.mxu0 %v793
        %815 = vmatprep.subr.bf16.mxu0 0
        %816 = vmatpush1.bf16.msra.mxu0 %v794
        %817 = vmatprep.subr.bf16.mxu0 0
        %818 = vmatpush1.bf16.msra.mxu0 %v795
        %819 = vmatprep.subr.bf16.mxu0 0
        %820 = vmatpush1.bf16.msra.mxu0 %v796
        %821 = vmatprep.subr.bf16.mxu0 0
        %822 = vmatpush1.bf16.msra.mxu0 0
        %823 = vmatprep.subr.bf16.mxu0 0
        %824 = vmatpush1.bf16.msra.mxu0 0
        %825 = vmatprep.subr.bf16.mxu0 0
        %826 = vmatpush1.bf16.msra.mxu0 0
        %827 = vmatprep.subr.bf16.mxu0 0
        %828 = vmatpush1.bf16.msra.mxu0 0
        %829 = vmatprep.subr.bf16.mxu0 0
        %830 = vmatpush1.bf16.msra.mxu0 0
        %831 = vmatprep.subr.bf16.mxu0 0
        %832 = vmatpush1.bf16.msra.mxu0 0
        %833 = vmatprep.subr.bf16.mxu0 0
        %834 = vmatpush1.bf16.msra.mxu0 0
        %835 = vmatprep.subr.bf16.mxu0 0
        %836 = vmatpush1.bf16.msra.mxu0 0
        %837 = vmatprep.mubr.bf16.mxu0 0
        %838 = vmatmul.mubr.bf16.gmra.mrb[0].mxu0 %v729
        %v839 = vpop.f32.mrb[0].mxu0
        %v840 = vadd.f32 %v756, %v839
        %v841 = vpop.f32.mrb[0].mxu0
        %v842 = vpop.f32.mrb[0].mxu0
        %v843 = vadd.f32 %v756, %v842
        %v844 = vpop.f32.mrb[0].mxu0
        %845 = vmatprep.mubr.bf16.mxu0 0
        %846 = vmatmul.mubr.bf16.gmra.mrb[0].mxu0 %v730
        %v847 = vpop.f32.mrb[0].mxu0
        %v848 = vadd.f32 %v756, %v847
        %v849 = vpop.f32.mrb[0].mxu0
        %v850 = vpop.f32.mrb[0].mxu0
        %v851 = vadd.f32 %v756, %v850
        %v852 = vpop.f32.mrb[0].mxu0
        %853 = vmatprep.mubr.bf16.mxu0 0
        %854 = vmatmul.mubr.bf16.gmra.mrb[0].mxu0 %v731
        %v855 = vpop.f32.mrb[0].mxu0
        %v856 = vadd.f32 %v756, %v855
        %v857 = vpop.f32.mrb[0].mxu0
        %v858 = vpop.f32.mrb[0].mxu0
        %v859 = vadd.f32 %v756, %v858
        %v860 = vpop.f32.mrb[0].mxu0
        %861 = vmatprep.mubr.bf16.mxu0 0
        %862 = vmatmul.mubr.bf16.gmra.mrb[0].mxu0 %v732
        %v863 = vpop.f32.mrb[0].mxu0
        %v864 = vadd.f32 %v756, %v863
        %v865 = vpop.f32.mrb[0].mxu0
        %v866 = vpop.f32.mrb[0].mxu0
        %v867 = vadd.f32 %v756, %v866
        %v868 = vpop.f32.mrb[0].mxu0
        %869 = vmatprep.mubr.bf16.mxu0 0
        %870 = vmatmul.mubr.bf16.gmra.mrb[0].mxu0 %v733
        %v871 = vpop.f32.mrb[0].mxu0
        %v872 = vadd.f32 %v756, %v871
        %v873 = vpop.f32.mrb[0].mxu0
        %v874 = vpop.f32.mrb[0].mxu0
        %v875 = vadd.f32 %v756, %v874
        %v876 = vpop.f32.mrb[0].mxu0
        %877 = vmatprep.mubr.bf16.mxu0 0
        %878 = vmatmul.mubr.bf16.gmra.mrb[0].mxu0 %v734
        %v879 = vpop.f32.mrb[0].mxu0
        %v880 = vadd.f32 %v756, %v879
        %v881 = vpop.f32.mrb[0].mxu0
        %v882 = vpop.f32.mrb[0].mxu0
        %v883 = vadd.f32 %v756, %v882
        %v884 = vpop.f32.mrb[0].mxu0
        %885 = vmatprep.mubr.bf16.mxu0 0
        %886 = vmatmul.mubr.bf16.gmra.mrb[0].mxu0 %v735
        %v887 = vpop.f32.mrb[0].mxu0
        %v888 = vadd.f32 %v756, %v887
        %v889 = vpop.f32.mrb[0].mxu0
        %v890 = vpop.f32.mrb[0].mxu0
        %v891 = vadd.f32 %v756, %v890
        %v892 = vpop.f32.mrb[0].mxu0
        %893 = vmatprep.mubr.bf16.mxu0 0
        %894 = vmatmul.mubr.bf16.gmra.mrb[0].mxu0 %v736
        %v895 = vpop.f32.mrb[0].mxu0
        %v896 = vadd.f32 %v756, %v895
        %v897 = vpop.f32.mrb[0].mxu0
        %v898 = vpop.f32.mrb[0].mxu0
        %v899 = vadd.f32 %v756, %v898
        %v900 = vpop.f32.mrb[0].mxu0
        %901 = vdwg.mxu0
        %902 = vadd.xlane.f32.xlu0 %v840
        %v903 = vpop.xlane.xlu0 %902
        %904 = vadd.xlane.f32.xlu0 %v843
        %v905 = vpop.xlane.xlu0 %904
        %906 = vadd.xlane.f32.xlu0 %v848
        %v907 = vpop.xlane.xlu0 %906
        %908 = vadd.xlane.f32.xlu0 %v851
        %v909 = vpop.xlane.xlu0 %908
        %910 = vadd.xlane.f32.xlu0 %v856
        %v911 = vpop.xlane.xlu0 %910
        %912 = vadd.xlane.f32.xlu0 %v859
        %v913 = vpop.xlane.xlu0 %912
        %914 = vadd.xlane.f32.xlu0 %v864
        %v915 = vpop.xlane.xlu0 %914
        %916 = vadd.xlane.f32.xlu0 %v867
        %v917 = vpop.xlane.xlu0 %916
        %918 = vadd.xlane.f32.xlu0 %v872
        %v919 = vpop.xlane.xlu0 %918
        %920 = vadd.xlane.f32.xlu0 %v875
        %v921 = vpop.xlane.xlu0 %920
        %922 = vadd.xlane.f32.xlu0 %v880
        %v923 = vpop.xlane.xlu0 %922
        %924 = vadd.xlane.f32.xlu0 %v883
        %v925 = vpop.xlane.xlu0 %924
        %926 = vadd.xlane.f32.xlu0 %v888
        %v927 = vpop.xlane.xlu0 %926
        %928 = vadd.xlane.f32.xlu0 %v891
        %v929 = vpop.xlane.xlu0 %928
        %930 = vadd.xlane.f32.xlu0 %v896
        %v931 = vpop.xlane.xlu0 %930
        %932 = vadd.xlane.f32.xlu0 %v899
        %v933 = vpop.xlane.xlu0 %932
        %v934 = vmul.f32 %v903, %v528
        %v935 = vmul.f32 %v905, %v528
        %v936 = vmul.f32 %v907, %v528
        %v937 = vmul.f32 %v909, %v528
        %v938 = vmul.f32 %v911, %v528
        %v939 = vmul.f32 %v913, %v528
        %v940 = vmul.f32 %v915, %v528
        %v941 = vmul.f32 %v917, %v528
        %v942 = vmul.f32 %v919, %v528
        %v943 = vmul.f32 %v921, %v528
        %v944 = vmul.f32 %v923, %v528
        %v945 = vmul.f32 %v925, %v528
        %v946 = vmul.f32 %v927, %v528
        %v947 = vmul.f32 %v929, %v528
        %v948 = vmul.f32 %v931, %v528
        %v949 = vmul.f32 %v933, %v528
        %v950 = vsub.f32 %v840, %v934
        %v951 = vsub.f32 %v843, %v935
        %v952 = vsub.f32 %v848, %v936
        %v953 = vsub.f32 %v851, %v937
        %v954 = vsub.f32 %v856, %v938
        %v955 = vsub.f32 %v859, %v939
        %v956 = vsub.f32 %v864, %v940
        %v957 = vsub.f32 %v867, %v941
        %v958 = vsub.f32 %v872, %v942
        %v959 = vsub.f32 %v875, %v943
        %v960 = vsub.f32 %v880, %v944
        %v961 = vsub.f32 %v883, %v945
        %v962 = vsub.f32 %v888, %v946
        %v963 = vsub.f32 %v891, %v947
        %v964 = vsub.f32 %v896, %v948
        %v965 = vsub.f32 %v899, %v949
        %v966 = vmul.f32 %v950, %v950
        %v967 = vmul.f32 %v951, %v951
        %v968 = vmul.f32 %v952, %v952
        %v969 = vmul.f32 %v953, %v953
        %v970 = vmul.f32 %v954, %v954
        %v971 = vmul.f32 %v955, %v955
        %v972 = vmul.f32 %v956, %v956
        %v973 = vmul.f32 %v957, %v957
        %v974 = vmul.f32 %v958, %v958
        %v975 = vmul.f32 %v959, %v959
        %v976 = vmul.f32 %v960, %v960
        %v977 = vmul.f32 %v961, %v961
        %v978 = vmul.f32 %v962, %v962
        %v979 = vmul.f32 %v963, %v963
        %v980 = vmul.f32 %v964, %v964
        %v981 = vmul.f32 %v965, %v965
        %982 = vadd.xlane.f32.xlu0 %v966
        %v983 = vpop.xlane.xlu0 %982
        %984 = vadd.xlane.f32.xlu0 %v967
        %v985 = vpop.xlane.xlu0 %984
        %986 = vadd.xlane.f32.xlu0 %v968
        %v987 = vpop.xlane.xlu0 %986
        %988 = vadd.xlane.f32.xlu0 %v969
        %v989 = vpop.xlane.xlu0 %988
        %990 = vadd.xlane.f32.xlu0 %v970
        %v991 = vpop.xlane.xlu0 %990
        %992 = vadd.xlane.f32.xlu0 %v971
        %v993 = vpop.xlane.xlu0 %992
        %994 = vadd.xlane.f32.xlu0 %v972
        %v995 = vpop.xlane.xlu0 %994
        %996 = vadd.xlane.f32.xlu0 %v973
        %v997 = vpop.xlane.xlu0 %996
        %998 = vadd.xlane.f32.xlu0 %v974
        %v999 = vpop.xlane.xlu0 %998
        %1000 = vadd.xlane.f32.xlu0 %v975
        %v1001 = vpop.xlane.xlu0 %1000
        %1002 = vadd.xlane.f32.xlu0 %v976
        %v1003 = vpop.xlane.xlu0 %1002
        %1004 = vadd.xlane.f32.xlu0 %v977
        %v1005 = vpop.xlane.xlu0 %1004
        %1006 = vadd.xlane.f32.xlu0 %v978
        %v1007 = vpop.xlane.xlu0 %1006
        %1008 = vadd.xlane.f32.xlu0 %v979
        %v1009 = vpop.xlane.xlu0 %1008
        %1010 = vadd.xlane.f32.xlu0 %v980
        %v1011 = vpop.xlane.xlu0 %1010
        %1012 = vadd.xlane.f32.xlu0 %v981
        %v1013 = vpop.xlane.xlu0 %1012
        %v1014 = vmul.f32 %v983, %v528
        %v1015 = vmul.f32 %v985, %v528
        %v1016 = vmul.f32 %v987, %v528
        %v1017 = vmul.f32 %v989, %v528
        %v1018 = vmul.f32 %v991, %v528
        %v1019 = vmul.f32 %v993, %v528
        %v1020 = vmul.f32 %v995, %v528
        %v1021 = vmul.f32 %v997, %v528
        %v1022 = vmul.f32 %v999, %v528
        %v1023 = vmul.f32 %v1001, %v528
        %v1024 = vmul.f32 %v1003, %v528
        %v1025 = vmul.f32 %v1005, %v528
        %v1026 = vmul.f32 %v1007, %v528
        %v1027 = vmul.f32 %v1009, %v528
        %v1028 = vmul.f32 %v1011, %v528
        %v1029 = vmul.f32 %v1013, %v528
        %v1030 = vadd.f32 %v1014, 1e-05
        %v1031 = vadd.f32 %v1015, 1e-05
        %v1032 = vadd.f32 %v1016, 1e-05
        %v1033 = vadd.f32 %v1017, 1e-05
        %v1034 = vadd.f32 %v1018, 1e-05
        %v1035 = vadd.f32 %v1019, 1e-05
        %v1036 = vadd.f32 %v1020, 1e-05
        %v1037 = vadd.f32 %v1021, 1e-05
        %v1038 = vadd.f32 %v1022, 1e-05
        %v1039 = vadd.f32 %v1023, 1e-05
        %v1040 = vadd.f32 %v1024, 1e-05
        %v1041 = vadd.f32 %v1025, 1e-05
        %v1042 = vadd.f32 %v1026, 1e-05
        %v1043 = vadd.f32 %v1027, 1e-05
        %v1044 = vadd.f32 %v1028, 1e-05
        %v1045 = vadd.f32 %v1029, 1e-05
        %v1046 = vrsqrt.pop %v1030
        %v1047 = vrsqrt.pop %v1031
        %v1048 = vrsqrt.pop %v1032
        %v1049 = vrsqrt.pop %v1033
        %v1050 = vrsqrt.pop %v1034
        %v1051 = vrsqrt.pop %v1035
        %v1052 = vrsqrt.pop %v1036
        %v1053 = vrsqrt.pop %v1037
        %v1054 = vrsqrt.pop %v1038
        %v1055 = vrsqrt.pop %v1039
        %v1056 = vrsqrt.pop %v1040
        %v1057 = vrsqrt.pop %v1041
        %v1058 = vrsqrt.pop %v1042
        %v1059 = vrsqrt.pop %v1043
        %v1060 = vrsqrt.pop %v1044
        %v1061 = vrsqrt.pop %v1045
        %v1062 = vmul.f32 %v950, %v1046
        %v1063 = vmul.f32 %v951, %v1047
        %v1064 = vmul.f32 %v952, %v1048
        %v1065 = vmul.f32 %v953, %v1049
        %v1066 = vmul.f32 %v954, %v1050
        %v1067 = vmul.f32 %v955, %v1051
        %v1068 = vmul.f32 %v956, %v1052
        %v1069 = vmul.f32 %v957, %v1053
        %v1070 = vmul.f32 %v958, %v1054
        %v1071 = vmul.f32 %v959, %v1055
        %v1072 = vmul.f32 %v960, %v1056
        %v1073 = vmul.f32 %v961, %v1057
        %v1074 = vmul.f32 %v962, %v1058
        %v1075 = vmul.f32 %v963, %v1059
        %v1076 = vmul.f32 %v964, %v1060
        %v1077 = vmul.f32 %v965, %v1061
        %v1078 = vlaneseq
        %v1079 = vshrl.u32 %v1078, 7
        %v1080 = vsub.s32 0, %v1079
        %v1081 = vrot.slane %v333, %v1080
        %v1082 = vmul.f32 %v1062, %v1081
        %v1083 = vmul.f32 %v1063, %v1081
        %v1084 = vmul.f32 %v1064, %v1081
        %v1085 = vmul.f32 %v1065, %v1081
        %v1086 = vmul.f32 %v1066, %v1081
        %v1087 = vmul.f32 %v1067, %v1081
        %v1088 = vmul.f32 %v1068, %v1081
        %v1089 = vmul.f32 %v1069, %v1081
        %v1090 = vmul.f32 %v1070, %v1081
        %v1091 = vmul.f32 %v1071, %v1081
        %v1092 = vmul.f32 %v1072, %v1081
        %v1093 = vmul.f32 %v1073, %v1081
        %v1094 = vmul.f32 %v1074, %v1081
        %v1095 = vmul.f32 %v1075, %v1081
        %v1096 = vmul.f32 %v1076, %v1081
        %v1097 = vmul.f32 %v1077, %v1081
        %v1098 = vlaneseq
        %v1099 = vshrl.u32 %v1098, 7
        %v1100 = vsub.s32 0, %v1099
        %v1101 = vrot.slane %v334, %v1100
        %v1102 = vadd.f32 %v1082, %v1101
        %v1103 = vadd.f32 %v1083, %v1101
        %v1104 = vadd.f32 %v1084, %v1101
        %v1105 = vadd.f32 %v1085, %v1101
        %v1106 = vadd.f32 %v1086, %v1101
        %v1107 = vadd.f32 %v1087, %v1101
        %v1108 = vadd.f32 %v1088, %v1101
        %v1109 = vadd.f32 %v1089, %v1101
        %v1110 = vadd.f32 %v1090, %v1101
        %v1111 = vadd.f32 %v1091, %v1101
        %v1112 = vadd.f32 %v1092, %v1101
        %v1113 = vadd.f32 %v1093, %v1101
        %v1114 = vadd.f32 %v1094, %v1101
        %v1115 = vadd.f32 %v1095, %v1101
        %v1116 = vadd.f32 %v1096, %v1101
        %v1117 = vadd.f32 %v1097, %v1101
        %v1118 = vld [vmem:[%s326] sm:$0xff]
        %v1119 = vld [vmem:[%s326 + $0x8] sm:$0xff]
        %v1120 = vld [vmem:[%s326 + $0x10] sm:$0xff]
        %v1121 = vld [vmem:[%s326 + $0x18] sm:$0xff]
        %v1122 = vld [vmem:[%s326 + $0x20] sm:$0xff]
        %v1123 = vld [vmem:[%s326 + $0x28] sm:$0xff]
        %v1124 = vld [vmem:[%s326 + $0x30] sm:$0xff]
        %v1125 = vld [vmem:[%s326 + $0x38] sm:$0xff]
        %v1126 = vld [vmem:[%s326 + $0x40] sm:$0xff]
        %v1127 = vld [vmem:[%s326 + $0x48] sm:$0xff]
        %v1128 = vld [vmem:[%s326 + $0x50] sm:$0xff]
        %v1129 = vld [vmem:[%s326 + $0x58] sm:$0xff]
        %v1130 = vld [vmem:[%s326 + $0x60] sm:$0xff]
        %v1131 = vld [vmem:[%s326 + $0x68] sm:$0xff]
        %v1132 = vld [vmem:[%s326 + $0x70] sm:$0xff]
        %v1133 = vld [vmem:[%s326 + $0x78] sm:$0xff]
        %v1134 = vld [vmem:[%s5] sm:$0xf]
        %1136 = vset.pattern.permute.xlu0 0
        %1137 = vperm.xlu0 %1136, %v1118
        %v1138 = vpop.permute.xlu0 %1137
        %1141 = vset.pattern.permute.xlu0 0
        %1142 = vperm.xlu0 %1141, %v1119
        %v1143 = vpop.permute.xlu0 %1142
        %1146 = vset.pattern.permute.xlu0 0
        %1147 = vperm.xlu0 %1146, %v1120
        %v1148 = vpop.permute.xlu0 %1147
        %1151 = vset.pattern.permute.xlu0 0
        %1152 = vperm.xlu0 %1151, %v1121
        %v1153 = vpop.permute.xlu0 %1152
        %1156 = vset.pattern.permute.xlu0 0
        %1157 = vperm.xlu0 %1156, %v1122
        %v1158 = vpop.permute.xlu0 %1157
        %1161 = vset.pattern.permute.xlu0 0
        %1162 = vperm.xlu0 %1161, %v1123
        %v1163 = vpop.permute.xlu0 %1162
        %1166 = vset.pattern.permute.xlu0 0
        %1167 = vperm.xlu0 %1166, %v1124
        %v1168 = vpop.permute.xlu0 %1167
        %1171 = vset.pattern.permute.xlu0 0
        %1172 = vperm.xlu0 %1171, %v1125
        %v1173 = vpop.permute.xlu0 %1172
        %1176 = vset.pattern.permute.xlu0 0
        %1177 = vperm.xlu0 %1176, %v1126
        %v1178 = vpop.permute.xlu0 %1177
        %1181 = vset.pattern.permute.xlu0 0
        %1182 = vperm.xlu0 %1181, %v1127
        %v1183 = vpop.permute.xlu0 %1182
        %1186 = vset.pattern.permute.xlu0 0
        %1187 = vperm.xlu0 %1186, %v1128
        %v1188 = vpop.permute.xlu0 %1187
        %1191 = vset.pattern.permute.xlu0 0
        %1192 = vperm.xlu0 %1191, %v1129
        %v1193 = vpop.permute.xlu0 %1192
        %1196 = vset.pattern.permute.xlu0 0
        %1197 = vperm.xlu0 %1196, %v1130
        %v1198 = vpop.permute.xlu0 %1197
        %1201 = vset.pattern.permute.xlu0 0
        %1202 = vperm.xlu0 %1201, %v1131
        %v1203 = vpop.permute.xlu0 %1202
        %1206 = vset.pattern.permute.xlu0 0
        %1207 = vperm.xlu0 %1206, %v1132
        %v1208 = vpop.permute.xlu0 %1207
        %1211 = vset.pattern.permute.xlu0 0
        %1212 = vperm.xlu0 %1211, %v1133
        %v1213 = vpop.permute.xlu0 %1212
        %v1215 = vlaneseq
        %v1216 = vshrl.u32 %v1215, 7
        %v1217 = vsub.s32 0, %v1216
        %v1218 = vrot.slane %v1134, %v1217
        %v1219 = vmul.f32 %v1138, %v1218
        %v1220 = vmul.f32 %v1143, %v1218
        %v1221 = vmul.f32 %v1148, %v1218
        %v1222 = vmul.f32 %v1153, %v1218
        %v1223 = vmul.f32 %v1158, %v1218
        %v1224 = vmul.f32 %v1163, %v1218
        %v1225 = vmul.f32 %v1168, %v1218
        %v1226 = vmul.f32 %v1173, %v1218
        %v1227 = vmul.f32 %v1178, %v1218
        %v1228 = vmul.f32 %v1183, %v1218
        %v1229 = vmul.f32 %v1188, %v1218
        %v1230 = vmul.f32 %v1193, %v1218
        %v1231 = vmul.f32 %v1198, %v1218
        %v1232 = vmul.f32 %v1203, %v1218
        %v1233 = vmul.f32 %v1208, %v1218
        %v1234 = vmul.f32 %v1213, %v1218
        %1235 = vset.pattern.permute.xlu0 1
        %1236 = vperm.xlu0 %1235, %v1118
        %v1237 = vpop.permute.xlu0 %1236
        %1239 = vset.pattern.permute.xlu0 1
        %1240 = vperm.xlu0 %1239, %v1119
        %v1241 = vpop.permute.xlu0 %1240
        %1243 = vset.pattern.permute.xlu0 1
        %1244 = vperm.xlu0 %1243, %v1120
        %v1245 = vpop.permute.xlu0 %1244
        %1247 = vset.pattern.permute.xlu0 1
        %1248 = vperm.xlu0 %1247, %v1121
        %v1249 = vpop.permute.xlu0 %1248
        %1251 = vset.pattern.permute.xlu0 1
        %1252 = vperm.xlu0 %1251, %v1122
        %v1253 = vpop.permute.xlu0 %1252
        %1255 = vset.pattern.permute.xlu0 1
        %1256 = vperm.xlu0 %1255, %v1123
        %v1257 = vpop.permute.xlu0 %1256
        %1259 = vset.pattern.permute.xlu0 1
        %1260 = vperm.xlu0 %1259, %v1124
        %v1261 = vpop.permute.xlu0 %1260
        %1263 = vset.pattern.permute.xlu0 1
        %1264 = vperm.xlu0 %1263, %v1125
        %v1265 = vpop.permute.xlu0 %1264
        %1267 = vset.pattern.permute.xlu0 1
        %1268 = vperm.xlu0 %1267, %v1126
        %v1269 = vpop.permute.xlu0 %1268
        %1271 = vset.pattern.permute.xlu0 1
        %1272 = vperm.xlu0 %1271, %v1127
        %v1273 = vpop.permute.xlu0 %1272
        %1275 = vset.pattern.permute.xlu0 1
        %1276 = vperm.xlu0 %1275, %v1128
        %v1277 = vpop.permute.xlu0 %1276
        %1279 = vset.pattern.permute.xlu0 1
        %1280 = vperm.xlu0 %1279, %v1129
        %v1281 = vpop.permute.xlu0 %1280
        %1283 = vset.pattern.permute.xlu0 1
        %1284 = vperm.xlu0 %1283, %v1130
        %v1285 = vpop.permute.xlu0 %1284
        %1287 = vset.pattern.permute.xlu0 1
        %1288 = vperm.xlu0 %1287, %v1131
        %v1289 = vpop.permute.xlu0 %1288
        %1291 = vset.pattern.permute.xlu0 1
        %1292 = vperm.xlu0 %1291, %v1132
        %v1293 = vpop.permute.xlu0 %1292
        %1295 = vset.pattern.permute.xlu0 1
        %1296 = vperm.xlu0 %1295, %v1133
        %v1297 = vpop.permute.xlu0 %1296
        %v1299 = vlaneseq
        %v1300 = vshrl.u32 %v1299, 7
        %v1301 = vsub.s32 1, %v1300
        %v1302 = vrot.slane %v1134, %v1301
        %v1303 = vmul.f32 %v1237, %v1302
        %v1304 = vmul.f32 %v1241, %v1302
        %v1305 = vmul.f32 %v1245, %v1302
        %v1306 = vmul.f32 %v1249, %v1302
        %v1307 = vmul.f32 %v1253, %v1302
        %v1308 = vmul.f32 %v1257, %v1302
        %v1309 = vmul.f32 %v1261, %v1302
        %v1310 = vmul.f32 %v1265, %v1302
        %v1311 = vmul.f32 %v1269, %v1302
        %v1312 = vmul.f32 %v1273, %v1302
        %v1313 = vmul.f32 %v1277, %v1302
        %v1314 = vmul.f32 %v1281, %v1302
        %v1315 = vmul.f32 %v1285, %v1302
        %v1316 = vmul.f32 %v1289, %v1302
        %v1317 = vmul.f32 %v1293, %v1302
        %v1318 = vmul.f32 %v1297, %v1302
        %v1319 = vadd.f32 %v1219, %v1303
        %v1320 = vadd.f32 %v1220, %v1304
        %v1321 = vadd.f32 %v1221, %v1305
        %v1322 = vadd.f32 %v1222, %v1306
        %v1323 = vadd.f32 %v1223, %v1307
        %v1324 = vadd.f32 %v1224, %v1308
        %v1325 = vadd.f32 %v1225, %v1309
        %v1326 = vadd.f32 %v1226, %v1310
        %v1327 = vadd.f32 %v1227, %v1311
        %v1328 = vadd.f32 %v1228, %v1312
        %v1329 = vadd.f32 %v1229, %v1313
        %v1330 = vadd.f32 %v1230, %v1314
        %v1331 = vadd.f32 %v1231, %v1315
        %v1332 = vadd.f32 %v1232, %v1316
        %v1333 = vadd.f32 %v1233, %v1317
        %v1334 = vadd.f32 %v1234, %v1318
        %1335 = vset.pattern.permute.xlu0 2
        %1336 = vperm.xlu0 %1335, %v1118
        %v1337 = vpop.permute.xlu0 %1336
        %1339 = vset.pattern.permute.xlu0 2
        %1340 = vperm.xlu0 %1339, %v1119
        %v1341 = vpop.permute.xlu0 %1340
        %1343 = vset.pattern.permute.xlu0 2
        %1344 = vperm.xlu0 %1343, %v1120
        %v1345 = vpop.permute.xlu0 %1344
        %1347 = vset.pattern.permute.xlu0 2
        %1348 = vperm.xlu0 %1347, %v1121
        %v1349 = vpop.permute.xlu0 %1348
        %1351 = vset.pattern.permute.xlu0 2
        %1352 = vperm.xlu0 %1351, %v1122
        %v1353 = vpop.permute.xlu0 %1352
        %1355 = vset.pattern.permute.xlu0 2
        %1356 = vperm.xlu0 %1355, %v1123
        %v1357 = vpop.permute.xlu0 %1356
        %1359 = vset.pattern.permute.xlu0 2
        %1360 = vperm.xlu0 %1359, %v1124
        %v1361 = vpop.permute.xlu0 %1360
        %1363 = vset.pattern.permute.xlu0 2
        %1364 = vperm.xlu0 %1363, %v1125
        %v1365 = vpop.permute.xlu0 %1364
        %1367 = vset.pattern.permute.xlu0 2
        %1368 = vperm.xlu0 %1367, %v1126
        %v1369 = vpop.permute.xlu0 %1368
        %1371 = vset.pattern.permute.xlu0 2
        %1372 = vperm.xlu0 %1371, %v1127
        %v1373 = vpop.permute.xlu0 %1372
        %1375 = vset.pattern.permute.xlu0 2
        %1376 = vperm.xlu0 %1375, %v1128
        %v1377 = vpop.permute.xlu0 %1376
        %1379 = vset.pattern.permute.xlu0 2
        %1380 = vperm.xlu0 %1379, %v1129
        %v1381 = vpop.permute.xlu0 %1380
        %1383 = vset.pattern.permute.xlu0 2
        %1384 = vperm.xlu0 %1383, %v1130
        %v1385 = vpop.permute.xlu0 %1384
        %1387 = vset.pattern.permute.xlu0 2
        %1388 = vperm.xlu0 %1387, %v1131
        %v1389 = vpop.permute.xlu0 %1388
        %1391 = vset.pattern.permute.xlu0 2
        %1392 = vperm.xlu0 %1391, %v1132
        %v1393 = vpop.permute.xlu0 %1392
        %1395 = vset.pattern.permute.xlu0 2
        %1396 = vperm.xlu0 %1395, %v1133
        %v1397 = vpop.permute.xlu0 %1396
        %v1399 = vlaneseq
        %v1400 = vshrl.u32 %v1399, 7
        %v1401 = vsub.s32 2, %v1400
        %v1402 = vrot.slane %v1134, %v1401
        %v1403 = vmul.f32 %v1337, %v1402
        %v1404 = vmul.f32 %v1341, %v1402
        %v1405 = vmul.f32 %v1345, %v1402
        %v1406 = vmul.f32 %v1349, %v1402
        %v1407 = vmul.f32 %v1353, %v1402
        %v1408 = vmul.f32 %v1357, %v1402
        %v1409 = vmul.f32 %v1361, %v1402
        %v1410 = vmul.f32 %v1365, %v1402
        %v1411 = vmul.f32 %v1369, %v1402
        %v1412 = vmul.f32 %v1373, %v1402
        %v1413 = vmul.f32 %v1377, %v1402
        %v1414 = vmul.f32 %v1381, %v1402
        %v1415 = vmul.f32 %v1385, %v1402
        %v1416 = vmul.f32 %v1389, %v1402
        %v1417 = vmul.f32 %v1393, %v1402
        %v1418 = vmul.f32 %v1397, %v1402
        %v1419 = vadd.f32 %v1319, %v1403
        %v1420 = vadd.f32 %v1320, %v1404
        %v1421 = vadd.f32 %v1321, %v1405
        %v1422 = vadd.f32 %v1322, %v1406
        %v1423 = vadd.f32 %v1323, %v1407
        %v1424 = vadd.f32 %v1324, %v1408
        %v1425 = vadd.f32 %v1325, %v1409
        %v1426 = vadd.f32 %v1326, %v1410
        %v1427 = vadd.f32 %v1327, %v1411
        %v1428 = vadd.f32 %v1328, %v1412
        %v1429 = vadd.f32 %v1329, %v1413
        %v1430 = vadd.f32 %v1330, %v1414
        %v1431 = vadd.f32 %v1331, %v1415
        %v1432 = vadd.f32 %v1332, %v1416
        %v1433 = vadd.f32 %v1333, %v1417
        %v1434 = vadd.f32 %v1334, %v1418
        %1435 = vset.pattern.permute.xlu0 3
        %1436 = vperm.xlu0 %1435, %v1118
        %v1437 = vpop.permute.xlu0 %1436
        %1439 = vset.pattern.permute.xlu0 3
        %1440 = vperm.xlu0 %1439, %v1119
        %v1441 = vpop.permute.xlu0 %1440
        %1443 = vset.pattern.permute.xlu0 3
        %1444 = vperm.xlu0 %1443, %v1120
        %v1445 = vpop.permute.xlu0 %1444
        %1447 = vset.pattern.permute.xlu0 3
        %1448 = vperm.xlu0 %1447, %v1121
        %v1449 = vpop.permute.xlu0 %1448
        %1451 = vset.pattern.permute.xlu0 3
        %1452 = vperm.xlu0 %1451, %v1122
        %v1453 = vpop.permute.xlu0 %1452
        %1455 = vset.pattern.permute.xlu0 3
        %1456 = vperm.xlu0 %1455, %v1123
        %v1457 = vpop.permute.xlu0 %1456
        %1459 = vset.pattern.permute.xlu0 3
        %1460 = vperm.xlu0 %1459, %v1124
        %v1461 = vpop.permute.xlu0 %1460
        %1463 = vset.pattern.permute.xlu0 3
        %1464 = vperm.xlu0 %1463, %v1125
        %v1465 = vpop.permute.xlu0 %1464
        %1467 = vset.pattern.permute.xlu0 3
        %1468 = vperm.xlu0 %1467, %v1126
        %v1469 = vpop.permute.xlu0 %1468
        %1471 = vset.pattern.permute.xlu0 3
        %1472 = vperm.xlu0 %1471, %v1127
        %v1473 = vpop.permute.xlu0 %1472
        %1475 = vset.pattern.permute.xlu0 3
        %1476 = vperm.xlu0 %1475, %v1128
        %v1477 = vpop.permute.xlu0 %1476
        %1479 = vset.pattern.permute.xlu0 3
        %1480 = vperm.xlu0 %1479, %v1129
        %v1481 = vpop.permute.xlu0 %1480
        %1483 = vset.pattern.permute.xlu0 3
        %1484 = vperm.xlu0 %1483, %v1130
        %v1485 = vpop.permute.xlu0 %1484
        %1487 = vset.pattern.permute.xlu0 3
        %1488 = vperm.xlu0 %1487, %v1131
        %v1489 = vpop.permute.xlu0 %1488
        %1491 = vset.pattern.permute.xlu0 3
        %1492 = vperm.xlu0 %1491, %v1132
        %v1493 = vpop.permute.xlu0 %1492
        %1495 = vset.pattern.permute.xlu0 3
        %1496 = vperm.xlu0 %1495, %v1133
        %v1497 = vpop.permute.xlu0 %1496
        %v1499 = vlaneseq
        %v1500 = vshrl.u32 %v1499, 7
        %v1501 = vsub.s32 3, %v1500
        %v1502 = vrot.slane %v1134, %v1501
        %v1503 = vmul.f32 %v1437, %v1502
        %v1504 = vmul.f32 %v1441, %v1502
        %v1505 = vmul.f32 %v1445, %v1502
        %v1506 = vmul.f32 %v1449, %v1502
        %v1507 = vmul.f32 %v1453, %v1502
        %v1508 = vmul.f32 %v1457, %v1502
        %v1509 = vmul.f32 %v1461, %v1502
        %v1510 = vmul.f32 %v1465, %v1502
        %v1511 = vmul.f32 %v1469, %v1502
        %v1512 = vmul.f32 %v1473, %v1502
        %v1513 = vmul.f32 %v1477, %v1502
        %v1514 = vmul.f32 %v1481, %v1502
        %v1515 = vmul.f32 %v1485, %v1502
        %v1516 = vmul.f32 %v1489, %v1502
        %v1517 = vmul.f32 %v1493, %v1502
        %v1518 = vmul.f32 %v1497, %v1502
        %v1519 = vadd.f32 %v1419, %v1503
        %v1520 = vadd.f32 %v1420, %v1504
        %v1521 = vadd.f32 %v1421, %v1505
        %v1522 = vadd.f32 %v1422, %v1506
        %v1523 = vadd.f32 %v1423, %v1507
        %v1524 = vadd.f32 %v1424, %v1508
        %v1525 = vadd.f32 %v1425, %v1509
        %v1526 = vadd.f32 %v1426, %v1510
        %v1527 = vadd.f32 %v1427, %v1511
        %v1528 = vadd.f32 %v1428, %v1512
        %v1529 = vadd.f32 %v1429, %v1513
        %v1530 = vadd.f32 %v1430, %v1514
        %v1531 = vadd.f32 %v1431, %v1515
        %v1532 = vadd.f32 %v1432, %v1516
        %v1533 = vadd.f32 %v1433, %v1517
        %v1534 = vadd.f32 %v1434, %v1518
        %v1535 = vlaneseq
        %v1536 = vshrl.u32 %v1535, 7
        %v1537 = vsub.s32 0, %v1536
        %v1538 = vrot.slane %v335, %v1537
        %v1539 = vadd.f32 %v1519, %v1538
        %v1540 = vadd.f32 %v1520, %v1538
        %v1541 = vadd.f32 %v1521, %v1538
        %v1542 = vadd.f32 %v1522, %v1538
        %v1543 = vadd.f32 %v1523, %v1538
        %v1544 = vadd.f32 %v1524, %v1538
        %v1545 = vadd.f32 %v1525, %v1538
        %v1546 = vadd.f32 %v1526, %v1538
        %v1547 = vadd.f32 %v1527, %v1538
        %v1548 = vadd.f32 %v1528, %v1538
        %v1549 = vadd.f32 %v1529, %v1538
        %v1550 = vadd.f32 %v1530, %v1538
        %v1551 = vadd.f32 %v1531, %v1538
        %v1552 = vadd.f32 %v1532, %v1538
        %v1553 = vadd.f32 %v1533, %v1538
        %v1554 = vadd.f32 %v1534, %v1538
        %v1555 = vmax.f32 %v1539, 0.0
        %v1556 = vmax.f32 %v1540, 0.0
        %v1557 = vmax.f32 %v1541, 0.0
        %v1558 = vmax.f32 %v1542, 0.0
        %v1559 = vmax.f32 %v1543, 0.0
        %v1560 = vmax.f32 %v1544, 0.0
        %v1561 = vmax.f32 %v1545, 0.0
        %v1562 = vmax.f32 %v1546, 0.0
        %v1563 = vmax.f32 %v1547, 0.0
        %v1564 = vmax.f32 %v1548, 0.0
        %v1565 = vmax.f32 %v1549, 0.0
        %v1566 = vmax.f32 %v1550, 0.0
        %v1567 = vmax.f32 %v1551, 0.0
        %v1568 = vmax.f32 %v1552, 0.0
        %v1569 = vmax.f32 %v1553, 0.0
        %v1570 = vmax.f32 %v1554, 0.0
        %v1571 = vadd.f32 %v1102, %v1555
        %v1572 = vadd.f32 %v1103, %v1556
        %v1573 = vadd.f32 %v1104, %v1557
        %v1574 = vadd.f32 %v1105, %v1558
        %v1575 = vadd.f32 %v1106, %v1559
        %v1576 = vadd.f32 %v1107, %v1560
        %v1577 = vadd.f32 %v1108, %v1561
        %v1578 = vadd.f32 %v1109, %v1562
        %v1579 = vadd.f32 %v1110, %v1563
        %v1580 = vadd.f32 %v1111, %v1564
        %v1581 = vadd.f32 %v1112, %v1565
        %v1582 = vadd.f32 %v1113, %v1566
        %v1583 = vadd.f32 %v1114, %v1567
        %v1584 = vadd.f32 %v1115, %v1568
        %v1585 = vadd.f32 %v1116, %v1569
        %v1586 = vadd.f32 %v1117, %v1570
        %v1587 = vmax.f32 %v1571, 0.0
        %v1588 = vmax.f32 %v1572, 0.0
        %v1589 = vmax.f32 %v1573, 0.0
        %v1590 = vmax.f32 %v1574, 0.0
        %v1591 = vmax.f32 %v1575, 0.0
        %v1592 = vmax.f32 %v1576, 0.0
        %v1593 = vmax.f32 %v1577, 0.0
        %v1594 = vmax.f32 %v1578, 0.0
        %v1595 = vmax.f32 %v1579, 0.0
        %v1596 = vmax.f32 %v1580, 0.0
        %v1597 = vmax.f32 %v1581, 0.0
        %v1598 = vmax.f32 %v1582, 0.0
        %v1599 = vmax.f32 %v1583, 0.0
        %v1600 = vmax.f32 %v1584, 0.0
        %v1601 = vmax.f32 %v1585, 0.0
        %v1602 = vmax.f32 %v1586, 0.0
        %v1603 = vstv %s337
        %1604 = vmatprep.subr.mxu0 0.0
        %1605 = vmatpush1.xpose.msra.mxu0 %v1587
        %1606 = vmatprep.subr.mxu0 0.0
        %1607 = vmatpush1.xpose.msra.mxu0 %v1588
        %1608 = vmatprep.subr.mxu0 0.0
        %1609 = vmatpush1.xpose.msra.mxu0 %v1589
        %1610 = vmatprep.subr.mxu0 0.0
        %1611 = vmatpush1.xpose.msra.mxu0 %v1590
        %1612 = vmatprep.subr.mxu0 0.0
        %1613 = vmatpush1.xpose.msra.mxu0 %v1591
        %1614 = vmatprep.subr.mxu0 0.0
        %1615 = vmatpush1.xpose.msra.mxu0 %v1592
        %1616 = vmatprep.subr.mxu0 0.0
        %1617 = vmatpush1.xpose.msra.mxu0 %v1593
        %1618 = vmatprep.subr.mxu0 0.0
        %1619 = vmatpush1.xpose.msra.mxu0 %v1594
        %1620 = vmatprep.subr.mxu0 0.0
        %1621 = vmatpush1.xpose.msra.mxu0 %v1595
        %1622 = vmatprep.subr.mxu0 0.0
        %1623 = vmatpush1.xpose.msra.mxu0 %v1596
        %1624 = vmatprep.subr.mxu0 0.0
        %1625 = vmatpush1.xpose.msra.mxu0 %v1597
        %1626 = vmatprep.subr.mxu0 0.0
        %1627 = vmatpush1.xpose.msra.mxu0 %v1598
        %1628 = vmatprep.subr.mxu0 0.0
        %1629 = vmatpush1.xpose.msra.mxu0 %v1599
        %1630 = vmatprep.subr.mxu0 0.0
        %1631 = vmatpush1.xpose.msra.mxu0 %v1600
        %1632 = vmatprep.subr.mxu0 0.0
        %1633 = vmatpush1.xpose.msra.mxu0 %v1601
        %1634 = vmatprep.subr.mxu0 0.0
        %1635 = vmatpush1.xpose.msra.mxu0 %v1602
        %1636 = vmatprep.subr.mxu0 0.0
        %1637 = vmatpush1.xpose.msra.mxu0 0.0
        %1638 = vmatprep.subr.mxu0 0.0
        %1639 = vmatpush1.xpose.msra.mxu0 0.0
        %1640 = vmatprep.subr.mxu0 0.0
        %1641 = vmatpush1.xpose.msra.mxu0 0.0
        %1642 = vmatprep.subr.mxu0 0.0
        %1643 = vmatpush1.xpose.msra.mxu0 0.0
        %1644 = vmatprep.subr.mxu0 0.0
        %1645 = vmatpush1.xpose.msra.mxu0 0.0
        %1646 = vmatprep.subr.mxu0 0.0
        %1647 = vmatpush1.xpose.msra.mxu0 0.0
        %1648 = vmatprep.subr.mxu0 0.0
        %1649 = vmatpush1.xpose.msra.mxu0 0.0
        %1650 = vmatprep.subr.mxu0 0.0
        %1651 = vmatpush1.xpose.msra.mxu0 0.0
        %1652 = vmatprep.subr.mxu0 0.0
        %1653 = vmatpush1.xpose.msra.mxu0 0.0
        %1654 = vmatprep.subr.mxu0 0.0
        %1655 = vmatpush1.xpose.msra.mxu0 0.0
        %1656 = vmatprep.subr.mxu0 0.0
        %1657 = vmatpush1.xpose.msra.mxu0 0.0
        %1658 = vmatprep.subr.mxu0 0.0
        %1659 = vmatpush1.xpose.msra.mxu0 0.0
        %1660 = vmatprep.subr.mxu0 0.0
        %1661 = vmatpush1.xpose.msra.mxu0 0.0
        %1662 = vmatprep.subr.mxu0 0.0
        %1663 = vmatpush1.xpose.msra.mxu0 0.0
        %1664 = vmatprep.subr.mxu0 0.0
        %1665 = vmatpush1.xpose.msra.mxu0 0.0
        %1666 = vmatprep.subr.mxu0 0.0
        %1667 = vmatpush1.xpose.msra.mxu0 0.0
        %1668 = vmatprep.mubr.f32.mxu0 0.0
        %1669 = vmatmul.mubr.f32.gmra.mrb[0].mxu0 %v336
        %v1670 = vpop.f32.mrb[0].mxu0
        %v1671 = vadd.f32 %v1603, %v1670
        %v1672 = vpop.f32.mrb[0].mxu0
        %1673 = vdwg.mxu0
        %1674 = vst [vmem:[%s315] sm:$0x1] %v1671
        %s1675 = sand.u32 %s209, 1
        %s1676 = scalar_lea.sflag [#allocation4], %s1675
        %s1677 = sand.u32 %s209, 1
        %s1678 = scalar_lea.vmem [#allocation3], %s1677
        // Predicated region
        $region53: #{critic_forward.1} parent=51 // pred_check
          %p1679 = pneg %p219
        $region54: #{critic_forward.1} parent=51 // pred_check_branch
          %1681 = sbr.rel (%p1679) target = $region56
        $region55: #{critic_forward.1} parent=51 // pred_region
          %s1683 = ssub.s32 16, 16
          %1684 = vsyncadd %s1676, %s1683
          %s1685 = smul.addr %s23, 16
          %s1686 = scalar_lea.hbm %s8, %s1685
          %s1688 = sshll.u32 %s1678, 4
          %s1689 = int_to_ptr.vmem [resolvable:$true] %s1688
          %1691 = dma.vmem_to_hbm [thread:$0]  %s1689, 16, %s1686, %s1676
        $region56: #{critic_forward.1} parent=51 // pred_fallthru
          _
      $region52: #{critic_forward.1} parent=5 // pred_fallthru
        _
      %p1692 = scmp.le.s32.totalorder 2, %s18
      // Predicated region
      $region57: #{critic_forward.1} parent=5 // pred_check
        %p1693 = pneg %p1692
      $region58: #{critic_forward.1} parent=5 // pred_check_branch
        %1695 = sbr.rel (%p1693) target = $region60
      $region59: #{critic_forward.1} parent=5 // pred_region
        %s1696 = ssub.s32 %s18, 2
        // Predicated region
        $region61: #{critic_forward.1} parent=59 // pred_check
          %p1697 = pneg %p225
        $region62: #{critic_forward.1} parent=59 // pred_check_branch
          %1699 = sbr.rel (%p1697) target = $region64
        $region63: #{critic_forward.1} parent=59 // pred_region
          %s1700 = sand.u32 %s210, 1
          %s1701 = scalar_lea.sflag [#allocation4], %s1700
          %s1702 = sand.u32 %s210, 1
          %s1703 = scalar_lea.vmem [#allocation3], %s1702
          %1704 = dma.done %s1701, 16
        $region64: #{critic_forward.1} parent=59 // pred_fallthru
          _
      $region60: #{critic_forward.1} parent=5 // pred_fallthru
        _
    $region6: #{critic_forward.1} parent=1 // loop_footer
      %s22 = sadd.s32 1, %s18
    $region7: #{critic_forward.1} parent=1 // loop_footer_branch
      %17 = sbr.rel target = $region3
    $region8: #{critic_forward.1} parent=1 // loop_exit
      _
    %1705 = vsyncpa [#allocation4], 1
    %s1706 = scalar_lea.sflag [#allocation4], 1
    %1707 = vsyncpa %s1706, 1

</llo_original>
